<compile_context>
chip_gen: v6e
topology: v6e:2x2x1
jax: 0.10.0
libtpu: 0.0.40
codegen_flags: <defaults>
</compile_context>

<pallas_src>
import jax
import jax.numpy as jnp
from jax import lax
from jax.experimental import pallas as pl
from jax.experimental.pallas import tpu as pltpu


def _lovasz_kernel(err_row_ref, tgt_row_ref, err_col_ref, tgt_col_ref,
                   out_ref, rank_acc, cum_acc, gts_acc):
    tile_i = err_col_ref.shape[0]
    tile_j = err_row_ref.shape[1]
    i = pl.program_id(0)
    j = pl.program_id(1)

    e_row = err_row_ref[...]          # (1, TILE_J)  hinge errors of the column-block elements
    t_row = tgt_row_ref[...]          # (1, TILE_J)
    e_col = err_col_ref[...]          # (TILE_I, 1)  hinge errors of the row-block elements
    t_col = tgt_col_ref[...]          # (TILE_I, 1)

    # Global element indices for the stable (original-index) tie-break.
    j_idx = j * tile_j + lax.broadcasted_iota(jnp.int32, (1, tile_j), 1)
    i_idx = i * tile_i + lax.broadcasted_iota(jnp.int32, (tile_i, 1), 0)

    # before[a, b] == True  <=>  element j_idx[b] sorts strictly before element i_idx[a]
    # in the stable descending sort of the hinge errors.
    before = (e_row > e_col) | ((e_row == e_col) & (j_idx < i_idx))   # (TILE_I, TILE_J)

    @pl.when(j == 0)
    def _init():
        rank_acc[...] = jnp.zeros_like(rank_acc)
        cum_acc[...] = jnp.zeros_like(cum_acc)
        gts_acc[...] = jnp.zeros_like(gts_acc)

    # rank_i : how many elements sort before element i (exact counts, exact in f32)
    # cum_i  : how many of those are positives (exclusive cumsum of gt_sorted at rank_i)
    # gts    : total number of positive labels
    rank_acc[...] += jnp.sum(jnp.where(before, 1.0, 0.0), axis=1, keepdims=True)
    cum_acc[...] += jnp.sum(jnp.where(before, t_row, 0.0), axis=1, keepdims=True)
    gts_acc[...] += jnp.sum(t_row, keepdims=True)

    @pl.when(j == pl.num_programs(1) - 1)
    def _finalize():
        rank = rank_acc[...]                      # (TILE_I, 1)
        gts = gts_acc[...]                        # (1, 1), broadcasts
        cum = cum_acc[...] + t_col                # inclusive cumsum at sorted position rank

        # jaccard at sorted position r = rank   (cumsum(1-g)[r] = (r+1) - cum)
        inter = gts - cum
        union = gts + (rank + 1.0) - cum          # always >= 1
        jac = 1.0 - inter / union

        # jaccard at position r - 1   (exclusive cumsum = cum - target[i])
        cum_prev = cum - t_col
        inter_p = gts - cum_prev
        union_p = gts + rank - cum_prev
        union_p = jnp.where(rank == 0.0, 1.0, union_p)   # guard 0/0 when gts == 0
        jac_prev = 1.0 - inter_p / union_p

        # Lovasz gradient seen by this element and its loss contribution.
        grad = jnp.where(rank == 0.0, jac, jac - jac_prev)            # (TILE_I, 1)
        elu_p1 = jnp.where(e_col > 0.0, e_col + 1.0, jnp.exp(e_col))  # elu(err) + 1
        out_ref[...] = elu_p1 * grad


def _pick_tile(n, quantum, cap):
    """Largest multiple of `quantum` that divides n and is <= cap."""
    best = quantum
    t = quantum
    while t <= min(n, cap):
        if n % t == 0:
            best = t
        t += quantum
    return best


def lovasz_hinge_loss(logit, target, ignore_index=None):
    """Pallas equivalent of _LovaszLoss.forward (ignore_index=None)."""
    # TODO(synk): ignore_index masking needs data-dependent boolean compaction (dynamic
    # flattened length); not implemented in this static-shape kernel.
    assert ignore_index is None

    logit_f = logit.reshape(-1).astype(jnp.float32)
    target_f = target.reshape(-1).astype(jnp.float32)
    p = logit_f.shape[0]
    # TODO(synk): non-multiple-of-128 sizes need padding with masked errors excluded
    # from gts/rank; not implemented here.
    assert p % 128 == 0, "flattened size must be a multiple of 128 for this kernel"

    # Hinge errors computed once so the (1,P) row view and (P,1) column view used by the
    # pairwise compare are bitwise identical (keeps the stable tie-break exact).
    errors = 1.0 - logit_f * (2.0 * target_f - 1.0)

    tile_i = 128                        # sublane block (multiple of 8; divides P)
    tile_j = _pick_tile(p, 128, 2048)   # lane block (multiple of 128; divides P)
    gi = p // tile_i
    gj = p // tile_j

    err_row = errors.reshape(1, p)
    tgt_row = target_f.reshape(1, p)
    err_col = errors.reshape(p, 1)
    tgt_col = target_f.reshape(p, 1)

    grid_spec = pltpu.PrefetchScalarGridSpec(
        num_scalar_prefetch=0,
        grid=(gi, gj),                   # (parallel row blocks, reduction over column blocks)
        in_specs=[
            pl.BlockSpec((1, tile_j), lambda i, j: (0, j)),
            pl.BlockSpec((1, tile_j), lambda i, j: (0, j)),
            pl.BlockSpec((tile_i, 1), lambda i, j: (i, 0)),
            pl.BlockSpec((tile_i, 1), lambda i, j: (i, 0)),
        ],
        out_specs=pl.BlockSpec((tile_i, 1), lambda i, j: (i, 0)),
        scratch_shapes=[
            pltpu.VMEM((tile_i, 1), jnp.float32),   # rank accumulator
            pltpu.VMEM((tile_i, 1), jnp.float32),   # positive-count accumulator
            pltpu.VMEM((1, 1), jnp.float32),        # gts accumulator
        ],
    )

    contrib = pl.pallas_call(
        _lovasz_kernel,
        out_shape=jax.ShapeDtypeStruct((p, 1), jnp.float32),
        grid_spec=grid_spec,
        compiler_params=pltpu.CompilerParams(
            dimension_semantics=("parallel", "arbitrary"),
            # Peak live VMEM is O(tile_i * tile_j) (a few MiB at most), independent of P,
            # so a single conservative limit works on v5e/v6e (128 MiB) and v7x (64 MiB).
            vmem_limit_bytes=32 << 20,
        ),
    )(err_row, tgt_row, err_col, tgt_col)

    # Per-element loss contributions; final O(P) reduction outside the kernel.
    return jnp.sum(contrib)


def _lovasz_ref(logit, target):
    """Pure-JAX reference mirroring the PyTorch code."""
    logit = logit.reshape(-1).astype(jnp.float32)
    target = target.reshape(-1).astype(jnp.float32)
    errors = 1.0 - logit * (2.0 * target - 1.0)
    perm = jnp.argsort(-errors)
    errors_sorted = errors[perm]
    gt_sorted = target[perm]
    gts = gt_sorted.sum()
    intersection = gts - jnp.cumsum(gt_sorted)
    union = gts + jnp.cumsum(1.0 - gt_sorted)
    jaccard = 1.0 - intersection / union
    grad = jnp.concatenate([jaccard[:1], jaccard[1:] - jaccard[:-1]])
    elu_p1 = jnp.where(errors_sorted > 0.0, errors_sorted + 1.0, jnp.exp(errors_sorted))
    return jnp.sum(elu_p1 * grad)


if __name__ == "__main__":
    key = jax.random.PRNGKey(0)
    k1, k2 = jax.random.split(key)
    # Binary-segmentation-like shapes: logits/targets [N, H, W] -> P = 2*16*16 = 512
    logit = jax.random.normal(k1, (2, 16, 16), dtype=jnp.float32)
    target = jax.random.bernoulli(k2, 0.5, (2, 16, 16)).astype(jnp.float32)

    loss = lovasz_hinge_loss(logit, target)
    jax.block_until_ready(loss)

    ref = _lovasz_ref(logit, target)
    assert jnp.allclose(loss, ref, rtol=1e-3, atol=1e-4), (float(loss), float(ref))
    print("KERNEL_OK")
</pallas_src>

<mosaic_0001>
module attributes {stable_mosaic.version = 11 : i64} {
  func.func @_lovasz_kernel(%arg0: i32, %arg1: i32, %arg2: memref<1x512xf32, #tpu.memory_space<vmem>>, %arg3: memref<1x512xf32, #tpu.memory_space<vmem>>, %arg4: memref<128x1xf32, #tpu.memory_space<vmem>>, %arg5: memref<128x1xf32, #tpu.memory_space<vmem>>, %arg6: memref<128x1xf32, #tpu.memory_space<vmem>>, %arg7: memref<128x1xf32, #tpu.memory_space<vmem>>, %arg8: memref<128x1xf32, #tpu.memory_space<vmem>>, %arg9: memref<1x1xf32, #tpu.memory_space<vmem>>) attributes {dimension_semantics = [#tpu.dimension_semantics<parallel>, #tpu.dimension_semantics<arbitrary>], iteration_bounds = array<i64: 4, 1>, scalar_prefetch = 0 : i64, scratch_operands = 3 : i64, tpu.core_type = #tpu.core_type<tc>, window_params = [{transform_indices = @transform_0, window_bounds = array<i64: 1, 512>}, {transform_indices = @transform_1, window_bounds = array<i64: 1, 512>}, {transform_indices = @transform_2, window_bounds = array<i64: 128, 1>}, {transform_indices = @transform_3, window_bounds = array<i64: 128, 1>}, {transform_indices = @transform_4, window_bounds = array<i64: 128, 1>}]} {
    %c0 = arith.constant 0 : index
    %c0_0 = arith.constant 0 : index
    %0 = vector.load %arg2[%c0, %c0_0] : memref<1x512xf32, #tpu.memory_space<vmem>>, vector<1x512xf32>
    %c0_1 = arith.constant 0 : index
    %c0_2 = arith.constant 0 : index
    %1 = vector.load %arg3[%c0_1, %c0_2] : memref<1x512xf32, #tpu.memory_space<vmem>>, vector<1x512xf32>
    %c0_3 = arith.constant 0 : index
    %c0_4 = arith.constant 0 : index
    %2 = vector.load %arg4[%c0_3, %c0_4] : memref<128x1xf32, #tpu.memory_space<vmem>>, vector<128x1xf32>
    %c0_5 = arith.constant 0 : index
    %c0_6 = arith.constant 0 : index
    %3 = vector.load %arg5[%c0_5, %c0_6] : memref<128x1xf32, #tpu.memory_space<vmem>>, vector<128x1xf32>
    %c512_i32 = arith.constant 512 : i32
    %4 = arith.muli %arg1, %c512_i32 : i32
    %5 = tpu.iota {dimensions = array<i32: 1>} : vector<1x512xi32>
    %6 = vector.broadcast %4 : i32 to vector<1x512xi32>
    %7 = arith.addi %6, %5 : vector<1x512xi32>
    %c128_i32 = arith.constant 128 : i32
    %8 = arith.muli %arg0, %c128_i32 : i32
    %9 = tpu.iota {dimensions = array<i32: 0>} : vector<128x1xi32>
    %10 = vector.broadcast %8 : i32 to vector<128x1xi32>
    %11 = arith.addi %10, %9 : vector<128x1xi32>
    %12 = vector.broadcast %0 : vector<1x512xf32> to vector<128x512xf32>
    %13 = vector.broadcast %2 : vector<128x1xf32> to vector<128x512xf32>
    %14 = arith.cmpf ogt, %12, %13 : vector<128x512xf32>
    %15 = vector.broadcast %0 : vector<1x512xf32> to vector<128x512xf32>
    %16 = vector.broadcast %2 : vector<128x1xf32> to vector<128x512xf32>
    %17 = arith.cmpf oeq, %15, %16 : vector<128x512xf32>
    %18 = vector.broadcast %7 : vector<1x512xi32> to vector<128x512xi32>
    %19 = vector.broadcast %11 : vector<128x1xi32> to vector<128x512xi32>
    %20 = arith.cmpi slt, %18, %19 : vector<128x512xi32>
    %21 = arith.andi %17, %20 : vector<128x512xi1>
    %22 = arith.ori %14, %21 : vector<128x512xi1>
    %c0_i32 = arith.constant 0 : i32
    %23 = arith.cmpi eq, %arg1, %c0_i32 : i32
    %24 = arith.extui %23 : i1 to i32
    %c0_i32_7 = arith.constant 0 : i32
    %25 = arith.cmpi ne, %24, %c0_i32_7 : i32
    scf.if %25 {
      %cst_27 = arith.constant 0.000000e+00 : f32
      %54 = vector.broadcast %cst_27 : f32 to vector<128x1xf32>
      %c0_28 = arith.constant 0 : index
      %c0_29 = arith.constant 0 : index
      %55 = vector.load %arg7[%c0_28, %c0_29] : memref<128x1xf32, #tpu.memory_space<vmem>>, vector<128x1xf32>
      tpu.vector_store %arg7[%c0_28, %c0_29], %54 {strides = array<i32>} : memref<128x1xf32, #tpu.memory_space<vmem>>, vector<128x1xf32>,
      %cst_30 = arith.constant 0.000000e+00 : f32
      %56 = vector.broadcast %cst_30 : f32 to vector<128x1xf32>
      %c0_31 = arith.constant 0 : index
      %c0_32 = arith.constant 0 : index
      %57 = vector.load %arg8[%c0_31, %c0_32] : memref<128x1xf32, #tpu.memory_space<vmem>>, vector<128x1xf32>
      tpu.vector_store %arg8[%c0_31, %c0_32], %56 {strides = array<i32>} : memref<128x1xf32, #tpu.memory_space<vmem>>, vector<128x1xf32>,
      %cst_33 = arith.constant 0.000000e+00 : f32
      %58 = vector.broadcast %cst_33 : f32 to vector<1x1xf32>
      %c0_34 = arith.constant 0 : index
      %c0_35 = arith.constant 0 : index
      %59 = vector.load %arg9[%c0_34, %c0_35] : memref<1x1xf32, #tpu.memory_space<vmem>>, vector<1x1xf32>
      tpu.vector_store %arg9[%c0_34, %c0_35], %58 {strides = array<i32>} : memref<1x1xf32, #tpu.memory_space<vmem>>, vector<1x1xf32>,
    } else {
    }
    %c0_8 = arith.constant 0 : index
    %c0_9 = arith.constant 0 : index
    %26 = vector.load %arg7[%c0_8, %c0_9] : memref<128x1xf32, #tpu.memory_space<vmem>>, vector<128x1xf32>
    %cst = arith.constant 1.000000e+00 : f32
    %cst_10 = arith.constant 0.000000e+00 : f32
    %27 = vector.broadcast %cst : f32 to vector<128x512xf32>
    %28 = vector.broadcast %cst_10 : f32 to vector<128x512xf32>
    %29 = arith.select %22, %27, %28 : vector<128x512xi1>, vector<128x512xf32>
    %cst_11 = arith.constant dense<0.000000e+00> : vector<128xf32>
    %30 = vector.multi_reduction <add>, %29, %cst_11 [1] : vector<128x512xf32> to vector<128xf32>
    %31 = vector.shape_cast %30 : vector<128xf32> to vector<128x1xf32>
    %32 = arith.addf %26, %31 : vector<128x1xf32>
    %c0_12 = arith.constant 0 : index
    %c0_13 = arith.constant 0 : index
    %33 = vector.load %arg7[%c0_12, %c0_13] : memref<128x1xf32, #tpu.memory_space<vmem>>, vector<128x1xf32>
    tpu.vector_store %arg7[%c0_12, %c0_13], %32 {strides = array<i32>} : memref<128x1xf32, #tpu.memory_space<vmem>>, vector<128x1xf32>,
    %c0_14 = arith.constant 0 : index
    %c0_15 = arith.constant 0 : index
    %34 = vector.load %arg8[%c0_14, %c0_15] : memref<128x1xf32, #tpu.memory_space<vmem>>, vector<128x1xf32>
    %cst_16 = arith.constant 0.000000e+00 : f32
    %35 = vector.shape_cast %1 : vector<1x512xf32> to vector<1x512xf32>
    %36 = vector.broadcast %35 : vector<1x512xf32> to vector<128x512xf32>
    %37 = vector.broadcast %cst_16 : f32 to vector<128x512xf32>
    %38 = arith.select %22, %36, %37 : vector<128x512xi1>, vector<128x512xf32>
    %cst_17 = arith.constant dense<0.000000e+00> : vector<128xf32>
    %39 = vector.multi_reduction <add>, %38, %cst_17 [1] : vector<128x512xf32> to vector<128xf32>
    %40 = vector.shape_cast %39 : vector<128xf32> to vector<128x1xf32>
    %41 = arith.addf %34, %40 : vector<128x1xf32>
    %c0_18 = arith.constant 0 : index
    %c0_19 = arith.constant 0 : index
    %42 = vector.load %arg8[%c0_18, %c0_19] : memref<128x1xf32, #tpu.memory_space<vmem>>, vector<128x1xf32>
    tpu.vector_store %arg8[%c0_18, %c0_19], %41 {strides = array<i32>} : memref<128x1xf32, #tpu.memory_space<vmem>>, vector<128x1xf32>,
    %c0_20 = arith.constant 0 : index
    %c0_21 = arith.constant 0 : index
    %43 = vector.load %arg9[%c0_20, %c0_21] : memref<1x1xf32, #tpu.memory_space<vmem>>, vector<1x1xf32>
    %44 = vector.shape_cast %1 : vector<1x512xf32> to vector<1x1x512xf32>
    %cst_22 = arith.constant dense<0.000000e+00> : vector<1xf32>
    %45 = vector.multi_reduction <add>, %44, %cst_22 [1, 2] : vector<1x1x512xf32> to vector<1xf32>
    %46 = vector.shape_cast %45 : vector<1xf32> to vector<1x1x1xf32>
    %47 = vector.extract %46[0, 0, 0] : f32 from vector<1x1x1xf32>
    %48 = vector.broadcast %47 : f32 to vector<1x1xf32>
    %49 = arith.addf %43, %48 : vector<1x1xf32>
    %c0_23 = arith.constant 0 : index
    %c0_24 = arith.constant 0 : index
    %50 = vector.load %arg9[%c0_23, %c0_24] : memref<1x1xf32, #tpu.memory_space<vmem>>, vector<1x1xf32>
    tpu.vector_store %arg9[%c0_23, %c0_24], %49 {strides = array<i32>} : memref<1x1xf32, #tpu.memory_space<vmem>>, vector<1x1xf32>,
    %c0_i32_25 = arith.constant 0 : i32
    %51 = arith.cmpi eq, %arg1, %c0_i32_25 : i32
    %52 = arith.extui %51 : i1 to i32
    %c0_i32_26 = arith.constant 0 : i32
    %53 = arith.cmpi ne, %52, %c0_i32_26 : i32
    scf.if %53 {
      %c0_27 = arith.constant 0 : index
      %c0_28 = arith.constant 0 : index
      %54 = vector.load %arg7[%c0_27, %c0_28] : memref<128x1xf32, #tpu.memory_space<vmem>>, vector<128x1xf32>
      %c0_29 = arith.constant 0 : index
      %c0_30 = arith.constant 0 : index
      %55 = vector.load %arg9[%c0_29, %c0_30] : memref<1x1xf32, #tpu.memory_space<vmem>>, vector<1x1xf32>
      %c0_31 = arith.constant 0 : index
      %c0_32 = arith.constant 0 : index
      %56 = vector.load %arg8[%c0_31, %c0_32] : memref<128x1xf32, #tpu.memory_space<vmem>>, vector<128x1xf32>
      %57 = arith.addf %56, %3 : vector<128x1xf32>
      %58 = vector.broadcast %55 : vector<1x1xf32> to vector<128x1xf32>
      %59 = arith.subf %58, %57 : vector<128x1xf32>
      %cst_33 = arith.constant 1.000000e+00 : f32
      %60 = vector.broadcast %cst_33 : f32 to vector<128x1xf32>
      %61 = arith.addf %54, %60 : vector<128x1xf32>
      %62 = vector.broadcast %55 : vector<1x1xf32> to vector<128x1xf32>
      %63 = arith.addf %62, %61 : vector<128x1xf32>
      %64 = arith.subf %63, %57 : vector<128x1xf32>
      %65 = arith.divf %59, %64 : vector<128x1xf32>
      %cst_34 = arith.constant 1.000000e+00 : f32
      %66 = vector.broadcast %cst_34 : f32 to vector<128x1xf32>
      %67 = arith.subf %66, %65 : vector<128x1xf32>
      %68 = arith.subf %57, %3 : vector<128x1xf32>
      %69 = vector.broadcast %55 : vector<1x1xf32> to vector<128x1xf32>
      %70 = arith.subf %69, %68 : vector<128x1xf32>
      %71 = vector.broadcast %55 : vector<1x1xf32> to vector<128x1xf32>
      %72 = arith.addf %71, %54 : vector<128x1xf32>
      %73 = arith.subf %72, %68 : vector<128x1xf32>
      %cst_35 = arith.constant 0.000000e+00 : f32
      %74 = vector.broadcast %cst_35 : f32 to vector<128x1xf32>
      %75 = arith.cmpf oeq, %54, %74 : vector<128x1xf32>
      %cst_36 = arith.constant 1.000000e+00 : f32
      %76 = vector.broadcast %cst_36 : f32 to vector<128x1xf32>
      %77 = arith.select %75, %76, %73 : vector<128x1xi1>, vector<128x1xf32>
      %78 = arith.divf %70, %77 : vector<128x1xf32>
      %cst_37 = arith.constant 1.000000e+00 : f32
      %79 = vector.broadcast %cst_37 : f32 to vector<128x1xf32>
      %80 = arith.subf %79, %78 : vector<128x1xf32>
      %cst_38 = arith.constant 0.000000e+00 : f32
      %81 = vector.broadcast %cst_38 : f32 to vector<128x1xf32>
      %82 = arith.cmpf oeq, %54, %81 : vector<128x1xf32>
      %83 = arith.subf %67, %80 : vector<128x1xf32>
      %84 = arith.select %82, %67, %83 : vector<128x1xi1>, vector<128x1xf32>
      %cst_39 = arith.constant 0.000000e+00 : f32
      %85 = vector.broadcast %cst_39 : f32 to vector<128x1xf32>
      %86 = arith.cmpf ogt, %2, %85 : vector<128x1xf32>
      %cst_40 = arith.constant 1.000000e+00 : f32
      %87 = vector.broadcast %cst_40 : f32 to vector<128x1xf32>
      %88 = arith.addf %2, %87 : vector<128x1xf32>
      %89 = math.exp %2 : vector<128x1xf32>
      %90 = arith.select %86, %88, %89 : vector<128x1xi1>, vector<128x1xf32>
      %91 = arith.mulf %90, %84 : vector<128x1xf32>
      %c0_41 = arith.constant 0 : index
      %c0_42 = arith.constant 0 : index
      %92 = vector.load %arg6[%c0_41, %c0_42] : memref<128x1xf32, #tpu.memory_space<vmem>>, vector<128x1xf32>
      tpu.vector_store %arg6[%c0_41, %c0_42], %91 {strides = array<i32>} : memref<128x1xf32, #tpu.memory_space<vmem>>, vector<128x1xf32>,
    } else {
    }
    return
  }
  func.func @transform_0(%arg0: i32, %arg1: i32) -> (i32, i32) {
    %c0_i32 = arith.constant 0 : i32
    %c0_i32_0 = arith.constant 0 : i32
    return %c0_i32, %arg1 : i32, i32
  }
  func.func @transform_1(%arg0: i32, %arg1: i32) -> (i32, i32) {
    %c0_i32 = arith.constant 0 : i32
    %c0_i32_0 = arith.constant 0 : i32
    return %c0_i32, %arg1 : i32, i32
  }
  func.func @transform_2(%arg0: i32, %arg1: i32) -> (i32, i32) {
    %c0_i32 = arith.constant 0 : i32
    %c0_i32_0 = arith.constant 0 : i32
    return %arg0, %c0_i32 : i32, i32
  }
  func.func @transform_3(%arg0: i32, %arg1: i32) -> (i32, i32) {
    %c0_i32 = arith.constant 0 : i32
    %c0_i32_0 = arith.constant 0 : i32
    return %arg0, %c0_i32 : i32, i32
  }
  func.func @transform_4(%arg0: i32, %arg1: i32) -> (i32, i32) {
    %c0_i32 = arith.constant 0 : i32
    %c0_i32_0 = arith.constant 0 : i32
    return %arg0, %c0_i32 : i32, i32
  }
}

</mosaic_0001>

<llo_original>
// kernel: tpu_custom_call.1
$region0: #{tpu_custom_call.1}
  #allocation0 [shape = 'u32[]', space=smem, size = 0x4, offset = 0x4, fixed_abs, tag = 'smem constant byte address 0x4 - core index']
  #allocation1 [shape = 'u32[144,128]{1,0:T(1,128)}', space=vmem, size = 0x12000, scoped, tag = 'internal scratch']
  #allocation2 [shape = 'f32[128,1]{1,0:T(8,128)}', space=vmem, size = 0x10000, scoped, tag = 'scratch operand']
  #allocation3 [shape = 'f32[128,1]{1,0:T(8,128)}', space=vmem, size = 0x10000, scoped, tag = 'scratch operand']
  #allocation4 [shape = 'f32[1,1]{1,0:T(1,128)}', space=vmem, size = 0x200, scoped, tag = 'scratch operand']
  %s0 = inlined_call_operand.vmem [shape: f32[1,512], index: 0, kind: input, shape index: {}]
  %s1 = inlined_call_operand.vmem [shape: f32[1,512], index: 1, kind: input, shape index: {}]
  %s2 = inlined_call_operand.vmem [shape: f32[512,1], index: 2, kind: input, shape index: {}]
  %s3 = inlined_call_operand.vmem [shape: f32[512,1], index: 3, kind: input, shape index: {}]
  %s4 = inlined_call_operand.vmem [shape: f32[512,1], index: 4, kind: output, shape index: {}]
  %s5 = sld [smem:[#allocation0]]
  $region57: #{tpu_custom_call.1} parent=0
    _
  %s7 = ssub.s32 1, %s5
  %s8 = scalar_select 0, %s7, %s5
  loop: start=0, step=1, limit=6
  $region2: #{tpu_custom_call.1} parent=0 // loop_pre_header
    _
  $region3: #{tpu_custom_call.1} parent=0 // loop_header
    %s10 = sphi 0, %s14
    %p11 = scmp.ge.s32.totalorder %s10, 6
    %s17 = sphi 0, %s29
    %s18 = sphi 0, %s25
    %s19 = sphi 0, %s17
    %s20 = sphi 0, %s18
    %s21 = sphi 0, %s19
    %s22 = sphi 0, %s20
    %s32 = sphi 0, %s34
    %s35 = sphi 0, %s32
    %s36 = sphi 0, %s35
    %s52 = sphi 0, %s36
    %s58 = sphi 0, %s60
    %s61 = sphi 0, %s58
    %s62 = sphi 0, %s61
    %s78 = sphi 0, %s62
    %s84 = sphi 0, %s86
    %s87 = sphi 0, %s84
    %s88 = sphi 0, %s87
    %s104 = sphi 0, %s88
    %s110 = sphi 0, %s112
    %s113 = sphi 0, %s110
    %s114 = sphi 0, %s113
    %s130 = sphi 0, %s114
    %s136 = sphi 0, %s138
    %s139 = sphi 0, %s136
    %s140 = sphi 0, %s139
    %s156 = sphi 0, %s140
  $region4: #{tpu_custom_call.1} parent=0 // loop_header_branch
    %13 = sbr.rel (%p11) target = $region8
  $region5: #{tpu_custom_call.1} parent=0 // loop_body
    %s15 = ssub.s32 %s10, 1
    %s16 = ssub.s32 %s10, 2
    %s23 = sadd.s32 1, %s18
    %p24 = scmp.ge.s32.totalorder %s23, 1
    %s25 = scalar_select %p24, 0, %s23
    %s26 = sadd.s32 1, %s17
    %s27 = scalar_select %p24, %s26, %s17
    %p28 = scmp.ge.s32.totalorder %s27, 4
    %s29 = scalar_select %p28, 0, %s27
    %s30 = ssub.s32 %s18, %s25
    %p31 = scmp.eq.s32.totalorder %s30, 0
    %s33 = sadd.s32 %s32, 1
    %s34 = scalar_select %p31, %s32, %s33
    %p37 = pneg %p31
    %p38 = scmp.eq.s32.totalorder %s10, 3
    %p39 = por %p37, %p38
    %p40 = scmp.ne.s32.totalorder %s32, %s35
    %p41 = scmp.eq.s32.totalorder %s10, 0
    %p42 = por %p40, %p41
    %p43 = scmp.ne.s32.totalorder %s32, %s35
    %p44 = scmp.eq.s32.totalorder %s15, 3
    %p45 = por %p43, %p44
    %p46 = scmp.ne.s32.totalorder %s35, %s36
    %p47 = scmp.eq.s32.totalorder %s15, 0
    %p48 = por %p46, %p47
    %p49 = scmp.ne.s32.totalorder %s35, %s36
    %p50 = scmp.eq.s32.totalorder %s16, 3
    %p51 = por %p49, %p50
    %p53 = scmp.ne.s32.totalorder %s36, %s52
    %p54 = scmp.eq.s32.totalorder %s16, 0
    %p55 = por %p53, %p54
    %s56 = ssub.s32 %s18, %s25
    %p57 = scmp.eq.s32.totalorder %s56, 0
    %s59 = sadd.s32 %s58, 1
    %s60 = scalar_select %p57, %s58, %s59
    %p63 = pneg %p57
    %p64 = scmp.eq.s32.totalorder %s10, 3
    %p65 = por %p63, %p64
    %p66 = scmp.ne.s32.totalorder %s58, %s61
    %p67 = scmp.eq.s32.totalorder %s10, 0
    %p68 = por %p66, %p67
    %p69 = scmp.ne.s32.totalorder %s58, %s61
    %p70 = scmp.eq.s32.totalorder %s15, 3
    %p71 = por %p69, %p70
    %p72 = scmp.ne.s32.totalorder %s61, %s62
    %p73 = scmp.eq.s32.totalorder %s15, 0
    %p74 = por %p72, %p73
    %p75 = scmp.ne.s32.totalorder %s61, %s62
    %p76 = scmp.eq.s32.totalorder %s16, 3
    %p77 = por %p75, %p76
    %p79 = scmp.ne.s32.totalorder %s62, %s78
    %p80 = scmp.eq.s32.totalorder %s16, 0
    %p81 = por %p79, %p80
    %s82 = ssub.s32 %s17, %s29
    %p83 = scmp.eq.s32.totalorder %s82, 0
    %s85 = sadd.s32 %s84, 1
    %s86 = scalar_select %p83, %s84, %s85
    %p89 = pneg %p83
    %p90 = scmp.eq.s32.totalorder %s10, 3
    %p91 = por %p89, %p90
    %p92 = scmp.ne.s32.totalorder %s84, %s87
    %p93 = scmp.eq.s32.totalorder %s10, 0
    %p94 = por %p92, %p93
    %p95 = scmp.ne.s32.totalorder %s84, %s87
    %p96 = scmp.eq.s32.totalorder %s15, 3
    %p97 = por %p95, %p96
    %p98 = scmp.ne.s32.totalorder %s87, %s88
    %p99 = scmp.eq.s32.totalorder %s15, 0
    %p100 = por %p98, %p99
    %p101 = scmp.ne.s32.totalorder %s87, %s88
    %p102 = scmp.eq.s32.totalorder %s16, 3
    %p103 = por %p101, %p102
    %p105 = scmp.ne.s32.totalorder %s88, %s104
    %p106 = scmp.eq.s32.totalorder %s16, 0
    %p107 = por %p105, %p106
    %s108 = ssub.s32 %s17, %s29
    %p109 = scmp.eq.s32.totalorder %s108, 0
    %s111 = sadd.s32 %s110, 1
    %s112 = scalar_select %p109, %s110, %s111
    %p115 = pneg %p109
    %p116 = scmp.eq.s32.totalorder %s10, 3
    %p117 = por %p115, %p116
    %p118 = scmp.ne.s32.totalorder %s110, %s113
    %p119 = scmp.eq.s32.totalorder %s10, 0
    %p120 = por %p118, %p119
    %p121 = scmp.ne.s32.totalorder %s110, %s113
    %p122 = scmp.eq.s32.totalorder %s15, 3
    %p123 = por %p121, %p122
    %p124 = scmp.ne.s32.totalorder %s113, %s114
    %p125 = scmp.eq.s32.totalorder %s15, 0
    %p126 = por %p124, %p125
    %p127 = scmp.ne.s32.totalorder %s113, %s114
    %p128 = scmp.eq.s32.totalorder %s16, 3
    %p129 = por %p127, %p128
    %p131 = scmp.ne.s32.totalorder %s114, %s130
    %p132 = scmp.eq.s32.totalorder %s16, 0
    %p133 = por %p131, %p132
    %s134 = ssub.s32 %s17, %s29
    %p135 = scmp.eq.s32.totalorder %s134, 0
    %s137 = sadd.s32 %s136, 1
    %s138 = scalar_select %p135, %s136, %s137
    %p141 = pneg %p135
    %p142 = scmp.eq.s32.totalorder %s10, 3
    %p143 = por %p141, %p142
    %p144 = scmp.ne.s32.totalorder %s136, %s139
    %p145 = scmp.eq.s32.totalorder %s10, 0
    %p146 = por %p144, %p145
    %p147 = scmp.ne.s32.totalorder %s136, %s139
    %p148 = scmp.eq.s32.totalorder %s15, 3
    %p149 = por %p147, %p148
    %p150 = scmp.ne.s32.totalorder %s139, %s140
    %p151 = scmp.eq.s32.totalorder %s15, 0
    %p152 = por %p150, %p151
    %p153 = scmp.ne.s32.totalorder %s139, %s140
    %p154 = scmp.eq.s32.totalorder %s16, 3
    %p155 = por %p153, %p154
    %p157 = scmp.ne.s32.totalorder %s140, %s156
    %p158 = scmp.eq.s32.totalorder %s16, 0
    %p159 = por %p157, %p158
    %p160 = scmp.le.s32.totalorder 1, %s10
    %p161 = scmp.lt.s32.totalorder %s10, 5
    %p162 = pnand %p160, %p161
    %p163 = pneg %p162
    // Predicated region
    $region9: #{tpu_custom_call.1} parent=5 // pred_check
      _
    $region10: #{tpu_custom_call.1} parent=5 // pred_check_branch
      %165 = sbr.rel (%p162) target = $region12
    $region11: #{tpu_custom_call.1} parent=5 // pred_region
      %s166 = ssub.s32 %s10, 1
      // Predicated region
      $region13: #{tpu_custom_call.1} parent=11 // pred_check
        %p167 = pneg %p48
      $region14: #{tpu_custom_call.1} parent=11 // pred_check_branch
        %169 = sbr.rel (%p167) target = $region16
      $region15: #{tpu_custom_call.1} parent=11 // pred_region
        %s170 = smul.u32 4, %s20
        %p171 = scmp.lt.s32.totalorder %s170, 3
        %s172 = scalar_select %p171, %s170, 3
        %s173 = scalar_lea.vmem %s0, %s172
        %s174 = smul.u32 4, %s20
      $region16: #{tpu_custom_call.1} parent=11 // pred_fallthru
        _
      // Predicated region
      $region17: #{tpu_custom_call.1} parent=11 // pred_check
        %p175 = pneg %p74
      $region18: #{tpu_custom_call.1} parent=11 // pred_check_branch
        %177 = sbr.rel (%p175) target = $region20
      $region19: #{tpu_custom_call.1} parent=11 // pred_region
        %s178 = smul.u32 4, %s20
        %p179 = scmp.lt.s32.totalorder %s178, 3
        %s180 = scalar_select %p179, %s178, 3
        %s181 = scalar_lea.vmem %s1, %s180
        %s182 = smul.u32 4, %s20
      $region20: #{tpu_custom_call.1} parent=11 // pred_fallthru
        _
    $region12: #{tpu_custom_call.1} parent=5 // pred_fallthru
      _
    %p183 = scmp.lt.s32.totalorder %s10, 4
    // Predicated region
    $region21: #{tpu_custom_call.1} parent=5 // pred_check
      %p184 = pneg %p183
    $region22: #{tpu_custom_call.1} parent=5 // pred_check_branch
      %186 = sbr.rel (%p184) target = $region24
    $region23: #{tpu_custom_call.1} parent=5 // pred_region
      // Predicated region
      $region25: #{tpu_custom_call.1} parent=23 // pred_check
        %p187 = pneg %p94
      $region26: #{tpu_custom_call.1} parent=23 // pred_check_branch
        %189 = sbr.rel (%p187) target = $region28
      $region27: #{tpu_custom_call.1} parent=23 // pred_region
        %s190 = smul.u32 16, %s17
        %p191 = scmp.lt.s32.totalorder %s190, 63
        %s192 = scalar_select %p191, %s190, 63
        %s193 = smul.addr %s192, 8
        %s194 = scalar_lea.vmem %s2, %s193
        %s195 = smul.u32 16, %s17
      $region28: #{tpu_custom_call.1} parent=23 // pred_fallthru
        _
      // Predicated region
      $region29: #{tpu_custom_call.1} parent=23 // pred_check
        %p196 = pneg %p120
      $region30: #{tpu_custom_call.1} parent=23 // pred_check_branch
        %198 = sbr.rel (%p196) target = $region32
      $region31: #{tpu_custom_call.1} parent=23 // pred_region
        %s199 = smul.u32 16, %s17
        %p200 = scmp.lt.s32.totalorder %s199, 63
        %s201 = scalar_select %p200, %s199, 63
        %s202 = smul.addr %s201, 8
        %s203 = scalar_lea.vmem %s3, %s202
        %s204 = smul.u32 16, %s17
      $region32: #{tpu_custom_call.1} parent=23 // pred_fallthru
        _
    $region24: #{tpu_custom_call.1} parent=5 // pred_fallthru
      _
    %p205 = scmp.le.s32.totalorder 1, %s10
    %p206 = scmp.lt.s32.totalorder %s10, 5
    %p207 = pnand %p205, %p206
    %p208 = pneg %p207
    // Predicated region
    $region33: #{tpu_custom_call.1} parent=5 // pred_check
      _
    $region34: #{tpu_custom_call.1} parent=5 // pred_check_branch
      %210 = sbr.rel (%p207) target = $region36
    $region35: #{tpu_custom_call.1} parent=5 // pred_region
      %s211 = ssub.s32 %s10, 1
      %s212 = smul.u32 4, %s20
      %p213 = scmp.lt.s32.totalorder %s212, 3
      %s214 = scalar_select %p213, %s212, 3
      %s215 = scalar_lea.vmem %s0, %s214
      %p216 = pneg %p48
      %p217 = pneg %p45
      %s218 = smul.u32 4, %s20
      %p219 = scmp.lt.s32.totalorder %s218, 3
      %s220 = scalar_select %p219, %s218, 3
      %s221 = scalar_lea.vmem %s1, %s220
      %p222 = pneg %p74
      %p223 = pneg %p71
      %s224 = smul.u32 16, %s19
      %p225 = scmp.lt.s32.totalorder %s224, 63
      %s226 = scalar_select %p225, %s224, 63
      %s227 = smul.addr %s226, 8
      %s228 = scalar_lea.vmem %s2, %s227
      %p229 = pneg %p100
      %p230 = pneg %p97
      %s231 = smul.u32 16, %s19
      %p232 = scmp.lt.s32.totalorder %s231, 63
      %s233 = scalar_select %p232, %s231, 63
      %s234 = smul.addr %s233, 8
      %s235 = scalar_lea.vmem %s3, %s234
      %p236 = pneg %p126
      %p237 = pneg %p123
      %p238 = pneg %p152
      %p239 = pneg %p149
      %s240 = smul.u32 16, %s19
      %p241 = scmp.lt.s32.totalorder %s240, 63
      %s242 = scalar_select %p241, %s240, 63
      %s243 = smul.addr %s242, 8
      %s244 = scalar_lea.vmem %s4, %s243
      %s245 = smul.u32 4, %s20
      %p246 = scmp.lt.s32.totalorder %s245, 3
      %s247 = scalar_select %p246, %s245, 3
      %s248 = scalar_lea.vmem %s0, %s247
      %s249 = smul.u32 4, %s20
      %s250 = smul.u32 4, %s20
      %p251 = scmp.lt.s32.totalorder %s250, 3
      %s252 = scalar_select %p251, %s250, 3
      %s253 = scalar_lea.vmem %s1, %s252
      %s254 = smul.u32 4, %s20
      %s255 = smul.u32 16, %s19
      %p256 = scmp.lt.s32.totalorder %s255, 63
      %s257 = scalar_select %p256, %s255, 63
      %s258 = smul.addr %s257, 8
      %s259 = scalar_lea.vmem %s2, %s258
      %s260 = smul.u32 16, %s19
      %s261 = smul.u32 16, %s19
      %p262 = scmp.lt.s32.totalorder %s261, 63
      %s263 = scalar_select %p262, %s261, 63
      %s264 = smul.addr %s263, 8
      %s265 = scalar_lea.vmem %s3, %s264
      %s266 = smul.u32 16, %s19
      %s267 = smul.u32 16, %s19
      %p268 = scmp.lt.s32.totalorder %s267, 63
      %s269 = scalar_select %p268, %s267, 63
      %s270 = smul.addr %s269, 8
      %s271 = scalar_lea.vmem %s4, %s270
      %s272 = smul.u32 16, %s19
      %v273 = vld [vmem:[%s248] sm:$0xf]
      %v274 = vld [vmem:[%s253] sm:$0xf]
      %v275 = vld [vmem:[%s259] sm:$0xff]
      %v276 = vld [vmem:[%s259 + $0x8] sm:$0xff]
      %v277 = vld [vmem:[%s259 + $0x10] sm:$0xff]
      %v278 = vld [vmem:[%s259 + $0x18] sm:$0xff]
      %v279 = vld [vmem:[%s259 + $0x20] sm:$0xff]
      %v280 = vld [vmem:[%s259 + $0x28] sm:$0xff]
      %v281 = vld [vmem:[%s259 + $0x30] sm:$0xff]
      %v282 = vld [vmem:[%s259 + $0x38] sm:$0xff]
      %v283 = vld [vmem:[%s259 + $0x40] sm:$0xff]
      %v284 = vld [vmem:[%s259 + $0x48] sm:$0xff]
      %v285 = vld [vmem:[%s259 + $0x50] sm:$0xff]
      %v286 = vld [vmem:[%s259 + $0x58] sm:$0xff]
      %v287 = vld [vmem:[%s259 + $0x60] sm:$0xff]
      %v288 = vld [vmem:[%s259 + $0x68] sm:$0xff]
      %v289 = vld [vmem:[%s259 + $0x70] sm:$0xff]
      %v290 = vld [vmem:[%s259 + $0x78] sm:$0xff]
      %v291 = vld [vmem:[%s265] sm:$0xff]
      %v292 = vld [vmem:[%s265 + $0x8] sm:$0xff]
      %v293 = vld [vmem:[%s265 + $0x10] sm:$0xff]
      %v294 = vld [vmem:[%s265 + $0x18] sm:$0xff]
      %v295 = vld [vmem:[%s265 + $0x20] sm:$0xff]
      %v296 = vld [vmem:[%s265 + $0x28] sm:$0xff]
      %v297 = vld [vmem:[%s265 + $0x30] sm:$0xff]
      %v298 = vld [vmem:[%s265 + $0x38] sm:$0xff]
      %v299 = vld [vmem:[%s265 + $0x40] sm:$0xff]
      %v300 = vld [vmem:[%s265 + $0x48] sm:$0xff]
      %v301 = vld [vmem:[%s265 + $0x50] sm:$0xff]
      %v302 = vld [vmem:[%s265 + $0x58] sm:$0xff]
      %v303 = vld [vmem:[%s265 + $0x60] sm:$0xff]
      %v304 = vld [vmem:[%s265 + $0x68] sm:$0xff]
      %v305 = vld [vmem:[%s265 + $0x70] sm:$0xff]
      %v306 = vld [vmem:[%s265 + $0x78] sm:$0xff]
      %s307 = smul.u32 %s20, 512
      %v308 = vlaneseq
      %v309 = vand.u32 %v308, 127
      %v310 = vadd.s32 %v309, 128
      %v311 = vadd.s32 %v309, 256
      %v312 = vadd.s32 %v309, 384
      %v313 = vstv %s307
      %v314 = vadd.s32 %v313, %v309
      %v315 = vadd.s32 %v313, %v310
      %v316 = vadd.s32 %v313, %v311
      %v317 = vadd.s32 %v313, %v312
      %s318 = smul.u32 %s19, 128
      %v319 = vlaneseq
      %v320 = vshrl.u32 %v319, 7
      %v321 = vadd.s32 %v320, 8
      %v322 = vadd.s32 %v320, 16
      %v323 = vadd.s32 %v320, 24
      %v324 = vadd.s32 %v320, 32
      %v325 = vadd.s32 %v320, 40
      %v326 = vadd.s32 %v320, 48
      %v327 = vadd.s32 %v320, 56
      %v328 = vadd.s32 %v320, 64
      %v329 = vadd.s32 %v320, 72
      %v330 = vadd.s32 %v320, 80
      %v331 = vadd.s32 %v320, 88
      %v332 = vadd.s32 %v320, 96
      %v333 = vadd.s32 %v320, 104
      %v334 = vadd.s32 %v320, 112
      %v335 = vadd.s32 %v320, 120
      %v336 = vstv %s318
      %v337 = vadd.s32 %v336, %v320
      %v338 = vadd.s32 %v336, %v321
      %v339 = vadd.s32 %v336, %v322
      %v340 = vadd.s32 %v336, %v323
      %v341 = vadd.s32 %v336, %v324
      %v342 = vadd.s32 %v336, %v325
      %v343 = vadd.s32 %v336, %v326
      %v344 = vadd.s32 %v336, %v327
      %v345 = vadd.s32 %v336, %v328
      %v346 = vadd.s32 %v336, %v329
      %v347 = vadd.s32 %v336, %v330
      %v348 = vadd.s32 %v336, %v331
      %v349 = vadd.s32 %v336, %v332
      %v350 = vadd.s32 %v336, %v333
      %v351 = vadd.s32 %v336, %v334
      %v352 = vadd.s32 %v336, %v335
      %v354 = vlaneseq
      %v355 = vshrl.u32 %v354, 7
      %v356 = vsub.s32 0, %v355
      %v357 = vrot.slane %v273, %v356
      %v358 = vlaneseq
      %v359 = vshrl.u32 %v358, 7
      %v360 = vsub.s32 1, %v359
      %v361 = vrot.slane %v273, %v360
      %v362 = vlaneseq
      %v363 = vshrl.u32 %v362, 7
      %v364 = vsub.s32 2, %v363
      %v365 = vrot.slane %v273, %v364
      %v366 = vlaneseq
      %v367 = vshrl.u32 %v366, 7
      %v368 = vsub.s32 3, %v367
      %v369 = vrot.slane %v273, %v368
      %375 = vset.pattern.permute.xlu0 0
      %376 = vperm.xlu0 %375, %v275
      %v377 = vpop.permute.xlu0 %376
      %380 = vset.pattern.permute.xlu0 0
      %381 = vperm.xlu0 %380, %v276
      %v382 = vpop.permute.xlu0 %381
      %385 = vset.pattern.permute.xlu0 0
      %386 = vperm.xlu0 %385, %v277
      %v387 = vpop.permute.xlu0 %386
      %390 = vset.pattern.permute.xlu0 0
      %391 = vperm.xlu0 %390, %v278
      %v392 = vpop.permute.xlu0 %391
      %395 = vset.pattern.permute.xlu0 0
      %396 = vperm.xlu0 %395, %v279
      %v397 = vpop.permute.xlu0 %396
      %400 = vset.pattern.permute.xlu0 0
      %401 = vperm.xlu0 %400, %v280
      %v402 = vpop.permute.xlu0 %401
      %405 = vset.pattern.permute.xlu0 0
      %406 = vperm.xlu0 %405, %v281
      %v407 = vpop.permute.xlu0 %406
      %410 = vset.pattern.permute.xlu0 0
      %411 = vperm.xlu0 %410, %v282
      %v412 = vpop.permute.xlu0 %411
      %415 = vset.pattern.permute.xlu0 0
      %416 = vperm.xlu0 %415, %v283
      %v417 = vpop.permute.xlu0 %416
      %420 = vset.pattern.permute.xlu0 0
      %421 = vperm.xlu0 %420, %v284
      %v422 = vpop.permute.xlu0 %421
      %425 = vset.pattern.permute.xlu0 0
      %426 = vperm.xlu0 %425, %v285
      %v427 = vpop.permute.xlu0 %426
      %430 = vset.pattern.permute.xlu0 0
      %431 = vperm.xlu0 %430, %v286
      %v432 = vpop.permute.xlu0 %431
      %435 = vset.pattern.permute.xlu0 0
      %436 = vperm.xlu0 %435, %v287
      %v437 = vpop.permute.xlu0 %436
      %440 = vset.pattern.permute.xlu0 0
      %441 = vperm.xlu0 %440, %v288
      %v442 = vpop.permute.xlu0 %441
      %445 = vset.pattern.permute.xlu0 0
      %446 = vperm.xlu0 %445, %v289
      %v447 = vpop.permute.xlu0 %446
      %450 = vset.pattern.permute.xlu0 0
      %451 = vperm.xlu0 %450, %v290
      %v452 = vpop.permute.xlu0 %451
      %vm454 = vcmp.gt.f32.partialorder %v357, %v377
      %vm455 = vcmp.gt.f32.partialorder %v361, %v377
      %vm456 = vcmp.gt.f32.partialorder %v365, %v377
      %vm457 = vcmp.gt.f32.partialorder %v369, %v377
      %vm458 = vcmp.gt.f32.partialorder %v357, %v382
      %vm459 = vcmp.gt.f32.partialorder %v361, %v382
      %vm460 = vcmp.gt.f32.partialorder %v365, %v382
      %vm461 = vcmp.gt.f32.partialorder %v369, %v382
      %vm462 = vcmp.gt.f32.partialorder %v357, %v387
      %vm463 = vcmp.gt.f32.partialorder %v361, %v387
      %vm464 = vcmp.gt.f32.partialorder %v365, %v387
      %vm465 = vcmp.gt.f32.partialorder %v369, %v387
      %vm466 = vcmp.gt.f32.partialorder %v357, %v392
      %vm467 = vcmp.gt.f32.partialorder %v361, %v392
      %vm468 = vcmp.gt.f32.partialorder %v365, %v392
      %vm469 = vcmp.gt.f32.partialorder %v369, %v392
      %vm470 = vcmp.gt.f32.partialorder %v357, %v397
      %vm471 = vcmp.gt.f32.partialorder %v361, %v397
      %vm472 = vcmp.gt.f32.partialorder %v365, %v397
      %vm473 = vcmp.gt.f32.partialorder %v369, %v397
      %vm474 = vcmp.gt.f32.partialorder %v357, %v402
      %vm475 = vcmp.gt.f32.partialorder %v361, %v402
      %vm476 = vcmp.gt.f32.partialorder %v365, %v402
      %vm477 = vcmp.gt.f32.partialorder %v369, %v402
      %vm478 = vcmp.gt.f32.partialorder %v357, %v407
      %vm479 = vcmp.gt.f32.partialorder %v361, %v407
      %vm480 = vcmp.gt.f32.partialorder %v365, %v407
      %vm481 = vcmp.gt.f32.partialorder %v369, %v407
      %vm482 = vcmp.gt.f32.partialorder %v357, %v412
      %vm483 = vcmp.gt.f32.partialorder %v361, %v412
      %vm484 = vcmp.gt.f32.partialorder %v365, %v412
      %vm485 = vcmp.gt.f32.partialorder %v369, %v412
      %vm486 = vcmp.gt.f32.partialorder %v357, %v417
      %vm487 = vcmp.gt.f32.partialorder %v361, %v417
      %vm488 = vcmp.gt.f32.partialorder %v365, %v417
      %vm489 = vcmp.gt.f32.partialorder %v369, %v417
      %vm490 = vcmp.gt.f32.partialorder %v357, %v422
      %vm491 = vcmp.gt.f32.partialorder %v361, %v422
      %vm492 = vcmp.gt.f32.partialorder %v365, %v422
      %vm493 = vcmp.gt.f32.partialorder %v369, %v422
      %vm494 = vcmp.gt.f32.partialorder %v357, %v427
      %vm495 = vcmp.gt.f32.partialorder %v361, %v427
      %vm496 = vcmp.gt.f32.partialorder %v365, %v427
      %vm497 = vcmp.gt.f32.partialorder %v369, %v427
      %vm498 = vcmp.gt.f32.partialorder %v357, %v432
      %vm499 = vcmp.gt.f32.partialorder %v361, %v432
      %vm500 = vcmp.gt.f32.partialorder %v365, %v432
      %vm501 = vcmp.gt.f32.partialorder %v369, %v432
      %vm502 = vcmp.gt.f32.partialorder %v357, %v437
      %vm503 = vcmp.gt.f32.partialorder %v361, %v437
      %vm504 = vcmp.gt.f32.partialorder %v365, %v437
      %vm505 = vcmp.gt.f32.partialorder %v369, %v437
      %vm506 = vcmp.gt.f32.partialorder %v357, %v442
      %vm507 = vcmp.gt.f32.partialorder %v361, %v442
      %vm508 = vcmp.gt.f32.partialorder %v365, %v442
      %vm509 = vcmp.gt.f32.partialorder %v369, %v442
      %vm510 = vcmp.gt.f32.partialorder %v357, %v447
      %vm511 = vcmp.gt.f32.partialorder %v361, %v447
      %vm512 = vcmp.gt.f32.partialorder %v365, %v447
      %vm513 = vcmp.gt.f32.partialorder %v369, %v447
      %vm514 = vcmp.gt.f32.partialorder %v357, %v452
      %vm515 = vcmp.gt.f32.partialorder %v361, %v452
      %vm516 = vcmp.gt.f32.partialorder %v365, %v452
      %vm517 = vcmp.gt.f32.partialorder %v369, %v452
      %vm518 = vcmp.eq.f32.partialorder %v357, %v377
      %vm519 = vcmp.eq.f32.partialorder %v361, %v377
      %vm520 = vcmp.eq.f32.partialorder %v365, %v377
      %vm521 = vcmp.eq.f32.partialorder %v369, %v377
      %vm522 = vcmp.eq.f32.partialorder %v357, %v382
      %vm523 = vcmp.eq.f32.partialorder %v361, %v382
      %vm524 = vcmp.eq.f32.partialorder %v365, %v382
      %vm525 = vcmp.eq.f32.partialorder %v369, %v382
      %vm526 = vcmp.eq.f32.partialorder %v357, %v387
      %vm527 = vcmp.eq.f32.partialorder %v361, %v387
      %vm528 = vcmp.eq.f32.partialorder %v365, %v387
      %vm529 = vcmp.eq.f32.partialorder %v369, %v387
      %vm530 = vcmp.eq.f32.partialorder %v357, %v392
      %vm531 = vcmp.eq.f32.partialorder %v361, %v392
      %vm532 = vcmp.eq.f32.partialorder %v365, %v392
      %vm533 = vcmp.eq.f32.partialorder %v369, %v392
      %vm534 = vcmp.eq.f32.partialorder %v357, %v397
      %vm535 = vcmp.eq.f32.partialorder %v361, %v397
      %vm536 = vcmp.eq.f32.partialorder %v365, %v397
      %vm537 = vcmp.eq.f32.partialorder %v369, %v397
      %vm538 = vcmp.eq.f32.partialorder %v357, %v402
      %vm539 = vcmp.eq.f32.partialorder %v361, %v402
      %vm540 = vcmp.eq.f32.partialorder %v365, %v402
      %vm541 = vcmp.eq.f32.partialorder %v369, %v402
      %vm542 = vcmp.eq.f32.partialorder %v357, %v407
      %vm543 = vcmp.eq.f32.partialorder %v361, %v407
      %vm544 = vcmp.eq.f32.partialorder %v365, %v407
      %vm545 = vcmp.eq.f32.partialorder %v369, %v407
      %vm546 = vcmp.eq.f32.partialorder %v357, %v412
      %vm547 = vcmp.eq.f32.partialorder %v361, %v412
      %vm548 = vcmp.eq.f32.partialorder %v365, %v412
      %vm549 = vcmp.eq.f32.partialorder %v369, %v412
      %vm550 = vcmp.eq.f32.partialorder %v357, %v417
      %vm551 = vcmp.eq.f32.partialorder %v361, %v417
      %vm552 = vcmp.eq.f32.partialorder %v365, %v417
      %vm553 = vcmp.eq.f32.partialorder %v369, %v417
      %vm554 = vcmp.eq.f32.partialorder %v357, %v422
      %vm555 = vcmp.eq.f32.partialorder %v361, %v422
      %vm556 = vcmp.eq.f32.partialorder %v365, %v422
      %vm557 = vcmp.eq.f32.partialorder %v369, %v422
      %vm558 = vcmp.eq.f32.partialorder %v357, %v427
      %vm559 = vcmp.eq.f32.partialorder %v361, %v427
      %vm560 = vcmp.eq.f32.partialorder %v365, %v427
      %vm561 = vcmp.eq.f32.partialorder %v369, %v427
      %vm562 = vcmp.eq.f32.partialorder %v357, %v432
      %vm563 = vcmp.eq.f32.partialorder %v361, %v432
      %vm564 = vcmp.eq.f32.partialorder %v365, %v432
      %vm565 = vcmp.eq.f32.partialorder %v369, %v432
      %vm566 = vcmp.eq.f32.partialorder %v357, %v437
      %vm567 = vcmp.eq.f32.partialorder %v361, %v437
      %vm568 = vcmp.eq.f32.partialorder %v365, %v437
      %vm569 = vcmp.eq.f32.partialorder %v369, %v437
      %vm570 = vcmp.eq.f32.partialorder %v357, %v442
      %vm571 = vcmp.eq.f32.partialorder %v361, %v442
      %vm572 = vcmp.eq.f32.partialorder %v365, %v442
      %vm573 = vcmp.eq.f32.partialorder %v369, %v442
      %vm574 = vcmp.eq.f32.partialorder %v357, %v447
      %vm575 = vcmp.eq.f32.partialorder %v361, %v447
      %vm576 = vcmp.eq.f32.partialorder %v365, %v447
      %vm577 = vcmp.eq.f32.partialorder %v369, %v447
      %vm578 = vcmp.eq.f32.partialorder %v357, %v452
      %vm579 = vcmp.eq.f32.partialorder %v361, %v452
      %vm580 = vcmp.eq.f32.partialorder %v365, %v452
      %vm581 = vcmp.eq.f32.partialorder %v369, %v452
      %vm582 = vcmp.lt.s32.totalorder %v314, %v337
      %vm583 = vcmp.lt.s32.totalorder %v315, %v337
      %vm584 = vcmp.lt.s32.totalorder %v316, %v337
      %vm585 = vcmp.lt.s32.totalorder %v317, %v337
      %vm586 = vcmp.lt.s32.totalorder %v314, %v338
      %vm587 = vcmp.lt.s32.totalorder %v315, %v338
      %vm588 = vcmp.lt.s32.totalorder %v316, %v338
      %vm589 = vcmp.lt.s32.totalorder %v317, %v338
      %vm590 = vcmp.lt.s32.totalorder %v314, %v339
      %vm591 = vcmp.lt.s32.totalorder %v315, %v339
      %vm592 = vcmp.lt.s32.totalorder %v316, %v339
      %vm593 = vcmp.lt.s32.totalorder %v317, %v339
      %vm594 = vcmp.lt.s32.totalorder %v314, %v340
      %vm595 = vcmp.lt.s32.totalorder %v315, %v340
      %vm596 = vcmp.lt.s32.totalorder %v316, %v340
      %vm597 = vcmp.lt.s32.totalorder %v317, %v340
      %vm598 = vcmp.lt.s32.totalorder %v314, %v341
      %vm599 = vcmp.lt.s32.totalorder %v315, %v341
      %vm600 = vcmp.lt.s32.totalorder %v316, %v341
      %vm601 = vcmp.lt.s32.totalorder %v317, %v341
      %vm602 = vcmp.lt.s32.totalorder %v314, %v342
      %vm603 = vcmp.lt.s32.totalorder %v315, %v342
      %vm604 = vcmp.lt.s32.totalorder %v316, %v342
      %vm605 = vcmp.lt.s32.totalorder %v317, %v342
      %vm606 = vcmp.lt.s32.totalorder %v314, %v343
      %vm607 = vcmp.lt.s32.totalorder %v315, %v343
      %vm608 = vcmp.lt.s32.totalorder %v316, %v343
      %vm609 = vcmp.lt.s32.totalorder %v317, %v343
      %vm610 = vcmp.lt.s32.totalorder %v314, %v344
      %vm611 = vcmp.lt.s32.totalorder %v315, %v344
      %vm612 = vcmp.lt.s32.totalorder %v316, %v344
      %vm613 = vcmp.lt.s32.totalorder %v317, %v344
      %vm614 = vcmp.lt.s32.totalorder %v314, %v345
      %vm615 = vcmp.lt.s32.totalorder %v315, %v345
      %vm616 = vcmp.lt.s32.totalorder %v316, %v345
      %vm617 = vcmp.lt.s32.totalorder %v317, %v345
      %vm618 = vcmp.lt.s32.totalorder %v314, %v346
      %vm619 = vcmp.lt.s32.totalorder %v315, %v346
      %vm620 = vcmp.lt.s32.totalorder %v316, %v346
      %vm621 = vcmp.lt.s32.totalorder %v317, %v346
      %vm622 = vcmp.lt.s32.totalorder %v314, %v347
      %vm623 = vcmp.lt.s32.totalorder %v315, %v347
      %vm624 = vcmp.lt.s32.totalorder %v316, %v347
      %vm625 = vcmp.lt.s32.totalorder %v317, %v347
      %vm626 = vcmp.lt.s32.totalorder %v314, %v348
      %vm627 = vcmp.lt.s32.totalorder %v315, %v348
      %vm628 = vcmp.lt.s32.totalorder %v316, %v348
      %vm629 = vcmp.lt.s32.totalorder %v317, %v348
      %vm630 = vcmp.lt.s32.totalorder %v314, %v349
      %vm631 = vcmp.lt.s32.totalorder %v315, %v349
      %vm632 = vcmp.lt.s32.totalorder %v316, %v349
      %vm633 = vcmp.lt.s32.totalorder %v317, %v349
      %vm634 = vcmp.lt.s32.totalorder %v314, %v350
      %vm635 = vcmp.lt.s32.totalorder %v315, %v350
      %vm636 = vcmp.lt.s32.totalorder %v316, %v350
      %vm637 = vcmp.lt.s32.totalorder %v317, %v350
      %vm638 = vcmp.lt.s32.totalorder %v314, %v351
      %vm639 = vcmp.lt.s32.totalorder %v315, %v351
      %vm640 = vcmp.lt.s32.totalorder %v316, %v351
      %vm641 = vcmp.lt.s32.totalorder %v317, %v351
      %vm642 = vcmp.lt.s32.totalorder %v314, %v352
      %vm643 = vcmp.lt.s32.totalorder %v315, %v352
      %vm644 = vcmp.lt.s32.totalorder %v316, %v352
      %vm645 = vcmp.lt.s32.totalorder %v317, %v352
      %vm646 = vmand %vm518, %vm582
      %vm647 = vmand %vm519, %vm583
      %vm648 = vmand %vm520, %vm584
      %vm649 = vmand %vm521, %vm585
      %vm650 = vmand %vm522, %vm586
      %vm651 = vmand %vm523, %vm587
      %vm652 = vmand %vm524, %vm588
      %vm653 = vmand %vm525, %vm589
      %vm654 = vmand %vm526, %vm590
      %vm655 = vmand %vm527, %vm591
      %vm656 = vmand %vm528, %vm592
      %vm657 = vmand %vm529, %vm593
      %vm658 = vmand %vm530, %vm594
      %vm659 = vmand %vm531, %vm595
      %vm660 = vmand %vm532, %vm596
      %vm661 = vmand %vm533, %vm597
      %vm662 = vmand %vm534, %vm598
      %vm663 = vmand %vm535, %vm599
      %vm664 = vmand %vm536, %vm600
      %vm665 = vmand %vm537, %vm601
      %vm666 = vmand %vm538, %vm602
      %vm667 = vmand %vm539, %vm603
      %vm668 = vmand %vm540, %vm604
      %vm669 = vmand %vm541, %vm605
      %vm670 = vmand %vm542, %vm606
      %vm671 = vmand %vm543, %vm607
      %vm672 = vmand %vm544, %vm608
      %vm673 = vmand %vm545, %vm609
      %vm674 = vmand %vm546, %vm610
      %vm675 = vmand %vm547, %vm611
      %vm676 = vmand %vm548, %vm612
      %vm677 = vmand %vm549, %vm613
      %vm678 = vmand %vm550, %vm614
      %vm679 = vmand %vm551, %vm615
      %vm680 = vmand %vm552, %vm616
      %vm681 = vmand %vm553, %vm617
      %vm682 = vmand %vm554, %vm618
      %vm683 = vmand %vm555, %vm619
      %vm684 = vmand %vm556, %vm620
      %vm685 = vmand %vm557, %vm621
      %vm686 = vmand %vm558, %vm622
      %vm687 = vmand %vm559, %vm623
      %vm688 = vmand %vm560, %vm624
      %vm689 = vmand %vm561, %vm625
      %vm690 = vmand %vm562, %vm626
      %vm691 = vmand %vm563, %vm627
      %vm692 = vmand %vm564, %vm628
      %vm693 = vmand %vm565, %vm629
      %vm694 = vmand %vm566, %vm630
      %vm695 = vmand %vm567, %vm631
      %vm696 = vmand %vm568, %vm632
      %vm697 = vmand %vm569, %vm633
      %vm698 = vmand %vm570, %vm634
      %vm699 = vmand %vm571, %vm635
      %vm700 = vmand %vm572, %vm636
      %vm701 = vmand %vm573, %vm637
      %vm702 = vmand %vm574, %vm638
      %vm703 = vmand %vm575, %vm639
      %vm704 = vmand %vm576, %vm640
      %vm705 = vmand %vm577, %vm641
      %vm706 = vmand %vm578, %vm642
      %vm707 = vmand %vm579, %vm643
      %vm708 = vmand %vm580, %vm644
      %vm709 = vmand %vm581, %vm645
      %vm710 = vmor %vm454, %vm646
      %vm711 = vmor %vm455, %vm647
      %vm712 = vmor %vm456, %vm648
      %vm713 = vmor %vm457, %vm649
      %vm714 = vmor %vm458, %vm650
      %vm715 = vmor %vm459, %vm651
      %vm716 = vmor %vm460, %vm652
      %vm717 = vmor %vm461, %vm653
      %vm718 = vmor %vm462, %vm654
      %vm719 = vmor %vm463, %vm655
      %vm720 = vmor %vm464, %vm656
      %vm721 = vmor %vm465, %vm657
      %vm722 = vmor %vm466, %vm658
      %vm723 = vmor %vm467, %vm659
      %vm724 = vmor %vm468, %vm660
      %vm725 = vmor %vm469, %vm661
      %vm726 = vmor %vm470, %vm662
      %vm727 = vmor %vm471, %vm663
      %vm728 = vmor %vm472, %vm664
      %vm729 = vmor %vm473, %vm665
      %vm730 = vmor %vm474, %vm666
      %vm731 = vmor %vm475, %vm667
      %vm732 = vmor %vm476, %vm668
      %vm733 = vmor %vm477, %vm669
      %vm734 = vmor %vm478, %vm670
      %vm735 = vmor %vm479, %vm671
      %vm736 = vmor %vm480, %vm672
      %vm737 = vmor %vm481, %vm673
      %vm738 = vmor %vm482, %vm674
      %vm739 = vmor %vm483, %vm675
      %vm740 = vmor %vm484, %vm676
      %vm741 = vmor %vm485, %vm677
      %vm742 = vmor %vm486, %vm678
      %vm743 = vmor %vm487, %vm679
      %vm744 = vmor %vm488, %vm680
      %vm745 = vmor %vm489, %vm681
      %vm746 = vmor %vm490, %vm682
      %vm747 = vmor %vm491, %vm683
      %vm748 = vmor %vm492, %vm684
      %vm749 = vmor %vm493, %vm685
      %vm750 = vmor %vm494, %vm686
      %vm751 = vmor %vm495, %vm687
      %vm752 = vmor %vm496, %vm688
      %vm753 = vmor %vm497, %vm689
      %vm754 = vmor %vm498, %vm690
      %vm755 = vmor %vm499, %vm691
      %vm756 = vmor %vm500, %vm692
      %vm757 = vmor %vm501, %vm693
      %vm758 = vmor %vm502, %vm694
      %vm759 = vmor %vm503, %vm695
      %vm760 = vmor %vm504, %vm696
      %vm761 = vmor %vm505, %vm697
      %vm762 = vmor %vm506, %vm698
      %vm763 = vmor %vm507, %vm699
      %vm764 = vmor %vm508, %vm700
      %vm765 = vmor %vm509, %vm701
      %vm766 = vmor %vm510, %vm702
      %vm767 = vmor %vm511, %vm703
      %vm768 = vmor %vm512, %vm704
      %vm769 = vmor %vm513, %vm705
      %vm770 = vmor %vm514, %vm706
      %vm771 = vmor %vm515, %vm707
      %vm772 = vmor %vm516, %vm708
      %vm773 = vmor %vm517, %vm709
      %p774 = scmp.eq.s32.totalorder %s20, 0
      // Predicated region
      $region37: #{tpu_custom_call.1} parent=35 // pred_check
        %p775 = pneg %p774
      $region38: #{tpu_custom_call.1} parent=35 // pred_check_branch
        %777 = sbr.rel (%p775) target = $region40
      $region39: #{tpu_custom_call.1} parent=35 // pred_region
        %vm778 = vcmask 7168
        %779 = vst.msk [vmem:[#allocation2] sm:$0xff] %vm778, 0.0
        %780 = vst.msk [vmem:[#allocation2 + $0x8] sm:$0xff] %vm778, 0.0
        %781 = vst.msk [vmem:[#allocation2 + $0x10] sm:$0xff] %vm778, 0.0
        %782 = vst.msk [vmem:[#allocation2 + $0x18] sm:$0xff] %vm778, 0.0
        %783 = vst.msk [vmem:[#allocation2 + $0x20] sm:$0xff] %vm778, 0.0
        %784 = vst.msk [vmem:[#allocation2 + $0x28] sm:$0xff] %vm778, 0.0
        %785 = vst.msk [vmem:[#allocation2 + $0x30] sm:$0xff] %vm778, 0.0
        %786 = vst.msk [vmem:[#allocation2 + $0x38] sm:$0xff] %vm778, 0.0
        %787 = vst.msk [vmem:[#allocation2 + $0x40] sm:$0xff] %vm778, 0.0
        %788 = vst.msk [vmem:[#allocation2 + $0x48] sm:$0xff] %vm778, 0.0
        %789 = vst.msk [vmem:[#allocation2 + $0x50] sm:$0xff] %vm778, 0.0
        %790 = vst.msk [vmem:[#allocation2 + $0x58] sm:$0xff] %vm778, 0.0
        %791 = vst.msk [vmem:[#allocation2 + $0x60] sm:$0xff] %vm778, 0.0
        %792 = vst.msk [vmem:[#allocation2 + $0x68] sm:$0xff] %vm778, 0.0
        %793 = vst.msk [vmem:[#allocation2 + $0x70] sm:$0xff] %vm778, 0.0
        %794 = vst.msk [vmem:[#allocation2 + $0x78] sm:$0xff] %vm778, 0.0
        %795 = vst.msk [vmem:[#allocation3] sm:$0xff] %vm778, 0.0
        %796 = vst.msk [vmem:[#allocation3 + $0x8] sm:$0xff] %vm778, 0.0
        %797 = vst.msk [vmem:[#allocation3 + $0x10] sm:$0xff] %vm778, 0.0
        %798 = vst.msk [vmem:[#allocation3 + $0x18] sm:$0xff] %vm778, 0.0
        %799 = vst.msk [vmem:[#allocation3 + $0x20] sm:$0xff] %vm778, 0.0
        %800 = vst.msk [vmem:[#allocation3 + $0x28] sm:$0xff] %vm778, 0.0
        %801 = vst.msk [vmem:[#allocation3 + $0x30] sm:$0xff] %vm778, 0.0
        %802 = vst.msk [vmem:[#allocation3 + $0x38] sm:$0xff] %vm778, 0.0
        %803 = vst.msk [vmem:[#allocation3 + $0x40] sm:$0xff] %vm778, 0.0
        %804 = vst.msk [vmem:[#allocation3 + $0x48] sm:$0xff] %vm778, 0.0
        %805 = vst.msk [vmem:[#allocation3 + $0x50] sm:$0xff] %vm778, 0.0
        %806 = vst.msk [vmem:[#allocation3 + $0x58] sm:$0xff] %vm778, 0.0
        %807 = vst.msk [vmem:[#allocation3 + $0x60] sm:$0xff] %vm778, 0.0
        %808 = vst.msk [vmem:[#allocation3 + $0x68] sm:$0xff] %vm778, 0.0
        %809 = vst.msk [vmem:[#allocation3 + $0x70] sm:$0xff] %vm778, 0.0
        %810 = vst.msk [vmem:[#allocation3 + $0x78] sm:$0xff] %vm778, 0.0
        %vm811 = vcmask 0
        %812 = vst.msk [vmem:[#allocation4] sm:$0x1] %vm811, 0.0
      $region40: #{tpu_custom_call.1} parent=35 // pred_fallthru
        _
      %v813 = vld [vmem:[#allocation2] sm:$0xff]
      %v814 = vld [vmem:[#allocation2 + $0x8] sm:$0xff]
      %v815 = vld [vmem:[#allocation2 + $0x10] sm:$0xff]
      %v816 = vld [vmem:[#allocation2 + $0x18] sm:$0xff]
      %v817 = vld [vmem:[#allocation2 + $0x20] sm:$0xff]
      %v818 = vld [vmem:[#allocation2 + $0x28] sm:$0xff]
      %v819 = vld [vmem:[#allocation2 + $0x30] sm:$0xff]
      %v820 = vld [vmem:[#allocation2 + $0x38] sm:$0xff]
      %v821 = vld [vmem:[#allocation2 + $0x40] sm:$0xff]
      %v822 = vld [vmem:[#allocation2 + $0x48] sm:$0xff]
      %v823 = vld [vmem:[#allocation2 + $0x50] sm:$0xff]
      %v824 = vld [vmem:[#allocation2 + $0x58] sm:$0xff]
      %v825 = vld [vmem:[#allocation2 + $0x60] sm:$0xff]
      %v826 = vld [vmem:[#allocation2 + $0x68] sm:$0xff]
      %v827 = vld [vmem:[#allocation2 + $0x70] sm:$0xff]
      %v828 = vld [vmem:[#allocation2 + $0x78] sm:$0xff]
      %v829 = vsel %vm710, 1.0, 0.0
      %v830 = vsel %vm711, 1.0, 0.0
      %v831 = vsel %vm712, 1.0, 0.0
      %v832 = vsel %vm713, 1.0, 0.0
      %v833 = vsel %vm714, 1.0, 0.0
      %v834 = vsel %vm715, 1.0, 0.0
      %v835 = vsel %vm716, 1.0, 0.0
      %v836 = vsel %vm717, 1.0, 0.0
      %v837 = vsel %vm718, 1.0, 0.0
      %v838 = vsel %vm719, 1.0, 0.0
      %v839 = vsel %vm720, 1.0, 0.0
      %v840 = vsel %vm721, 1.0, 0.0
      %v841 = vsel %vm722, 1.0, 0.0
      %v842 = vsel %vm723, 1.0, 0.0
      %v843 = vsel %vm724, 1.0, 0.0
      %v844 = vsel %vm725, 1.0, 0.0
      %v845 = vsel %vm726, 1.0, 0.0
      %v846 = vsel %vm727, 1.0, 0.0
      %v847 = vsel %vm728, 1.0, 0.0
      %v848 = vsel %vm729, 1.0, 0.0
      %v849 = vsel %vm730, 1.0, 0.0
      %v850 = vsel %vm731, 1.0, 0.0
      %v851 = vsel %vm732, 1.0, 0.0
      %v852 = vsel %vm733, 1.0, 0.0
      %v853 = vsel %vm734, 1.0, 0.0
      %v854 = vsel %vm735, 1.0, 0.0
      %v855 = vsel %vm736, 1.0, 0.0
      %v856 = vsel %vm737, 1.0, 0.0
      %v857 = vsel %vm738, 1.0, 0.0
      %v858 = vsel %vm739, 1.0, 0.0
      %v859 = vsel %vm740, 1.0, 0.0
      %v860 = vsel %vm741, 1.0, 0.0
      %v861 = vsel %vm742, 1.0, 0.0
      %v862 = vsel %vm743, 1.0, 0.0
      %v863 = vsel %vm744, 1.0, 0.0
      %v864 = vsel %vm745, 1.0, 0.0
      %v865 = vsel %vm746, 1.0, 0.0
      %v866 = vsel %vm747, 1.0, 0.0
      %v867 = vsel %vm748, 1.0, 0.0
      %v868 = vsel %vm749, 1.0, 0.0
      %v869 = vsel %vm750, 1.0, 0.0
      %v870 = vsel %vm751, 1.0, 0.0
      %v871 = vsel %vm752, 1.0, 0.0
      %v872 = vsel %vm753, 1.0, 0.0
      %v873 = vsel %vm754, 1.0, 0.0
      %v874 = vsel %vm755, 1.0, 0.0
      %v875 = vsel %vm756, 1.0, 0.0
      %v876 = vsel %vm757, 1.0, 0.0
      %v877 = vsel %vm758, 1.0, 0.0
      %v878 = vsel %vm759, 1.0, 0.0
      %v879 = vsel %vm760, 1.0, 0.0
      %v880 = vsel %vm761, 1.0, 0.0
      %v881 = vsel %vm762, 1.0, 0.0
      %v882 = vsel %vm763, 1.0, 0.0
      %v883 = vsel %vm764, 1.0, 0.0
      %v884 = vsel %vm765, 1.0, 0.0
      %v885 = vsel %vm766, 1.0, 0.0
      %v886 = vsel %vm767, 1.0, 0.0
      %v887 = vsel %vm768, 1.0, 0.0
      %v888 = vsel %vm769, 1.0, 0.0
      %v889 = vsel %vm770, 1.0, 0.0
      %v890 = vsel %vm771, 1.0, 0.0
      %v891 = vsel %vm772, 1.0, 0.0
      %v892 = vsel %vm773, 1.0, 0.0
      %v893 = vadd.f32 %v829, %v830
      %v894 = vadd.f32 %v893, %v831
      %v895 = vadd.f32 %v894, %v832
      %896 = vadd.xlane.f32.xlu0 %v895
      %v897 = vpop.xlane.xlu0 %896
      %v898 = vadd.f32 %v833, %v834
      %v899 = vadd.f32 %v898, %v835
      %v900 = vadd.f32 %v899, %v836
      %901 = vadd.xlane.f32.xlu0 %v900
      %v902 = vpop.xlane.xlu0 %901
      %v903 = vadd.f32 %v837, %v838
      %v904 = vadd.f32 %v903, %v839
      %v905 = vadd.f32 %v904, %v840
      %906 = vadd.xlane.f32.xlu0 %v905
      %v907 = vpop.xlane.xlu0 %906
      %v908 = vadd.f32 %v841, %v842
      %v909 = vadd.f32 %v908, %v843
      %v910 = vadd.f32 %v909, %v844
      %911 = vadd.xlane.f32.xlu0 %v910
      %v912 = vpop.xlane.xlu0 %911
      %v913 = vadd.f32 %v845, %v846
      %v914 = vadd.f32 %v913, %v847
      %v915 = vadd.f32 %v914, %v848
      %916 = vadd.xlane.f32.xlu0 %v915
      %v917 = vpop.xlane.xlu0 %916
      %v918 = vadd.f32 %v849, %v850
      %v919 = vadd.f32 %v918, %v851
      %v920 = vadd.f32 %v919, %v852
      %921 = vadd.xlane.f32.xlu0 %v920
      %v922 = vpop.xlane.xlu0 %921
      %v923 = vadd.f32 %v853, %v854
      %v924 = vadd.f32 %v923, %v855
      %v925 = vadd.f32 %v924, %v856
      %926 = vadd.xlane.f32.xlu0 %v925
      %v927 = vpop.xlane.xlu0 %926
      %v928 = vadd.f32 %v857, %v858
      %v929 = vadd.f32 %v928, %v859
      %v930 = vadd.f32 %v929, %v860
      %931 = vadd.xlane.f32.xlu0 %v930
      %v932 = vpop.xlane.xlu0 %931
      %v933 = vadd.f32 %v861, %v862
      %v934 = vadd.f32 %v933, %v863
      %v935 = vadd.f32 %v934, %v864
      %936 = vadd.xlane.f32.xlu0 %v935
      %v937 = vpop.xlane.xlu0 %936
      %v938 = vadd.f32 %v865, %v866
      %v939 = vadd.f32 %v938, %v867
      %v940 = vadd.f32 %v939, %v868
      %941 = vadd.xlane.f32.xlu0 %v940
      %v942 = vpop.xlane.xlu0 %941
      %v943 = vadd.f32 %v869, %v870
      %v944 = vadd.f32 %v943, %v871
      %v945 = vadd.f32 %v944, %v872
      %946 = vadd.xlane.f32.xlu0 %v945
      %v947 = vpop.xlane.xlu0 %946
      %v948 = vadd.f32 %v873, %v874
      %v949 = vadd.f32 %v948, %v875
      %v950 = vadd.f32 %v949, %v876
      %951 = vadd.xlane.f32.xlu0 %v950
      %v952 = vpop.xlane.xlu0 %951
      %v953 = vadd.f32 %v877, %v878
      %v954 = vadd.f32 %v953, %v879
      %v955 = vadd.f32 %v954, %v880
      %956 = vadd.xlane.f32.xlu0 %v955
      %v957 = vpop.xlane.xlu0 %956
      %v958 = vadd.f32 %v881, %v882
      %v959 = vadd.f32 %v958, %v883
      %v960 = vadd.f32 %v959, %v884
      %961 = vadd.xlane.f32.xlu0 %v960
      %v962 = vpop.xlane.xlu0 %961
      %v963 = vadd.f32 %v885, %v886
      %v964 = vadd.f32 %v963, %v887
      %v965 = vadd.f32 %v964, %v888
      %966 = vadd.xlane.f32.xlu0 %v965
      %v967 = vpop.xlane.xlu0 %966
      %v968 = vadd.f32 %v889, %v890
      %v969 = vadd.f32 %v968, %v891
      %v970 = vadd.f32 %v969, %v892
      %971 = vadd.xlane.f32.xlu0 %v970
      %v972 = vpop.xlane.xlu0 %971
      %v973 = vadd.f32 %v813, %v897
      %v974 = vadd.f32 %v814, %v902
      %v975 = vadd.f32 %v815, %v907
      %v976 = vadd.f32 %v816, %v912
      %v977 = vadd.f32 %v817, %v917
      %v978 = vadd.f32 %v818, %v922
      %v979 = vadd.f32 %v819, %v927
      %v980 = vadd.f32 %v820, %v932
      %v981 = vadd.f32 %v821, %v937
      %v982 = vadd.f32 %v822, %v942
      %v983 = vadd.f32 %v823, %v947
      %v984 = vadd.f32 %v824, %v952
      %v985 = vadd.f32 %v825, %v957
      %v986 = vadd.f32 %v826, %v962
      %v987 = vadd.f32 %v827, %v967
      %v988 = vadd.f32 %v828, %v972
      %vm989 = vcmask 7168
      %990 = vst.msk [vmem:[#allocation2] sm:$0xff] %vm989, %v973
      %991 = vst.msk [vmem:[#allocation2 + $0x8] sm:$0xff] %vm989, %v974
      %992 = vst.msk [vmem:[#allocation2 + $0x10] sm:$0xff] %vm989, %v975
      %993 = vst.msk [vmem:[#allocation2 + $0x18] sm:$0xff] %vm989, %v976
      %994 = vst.msk [vmem:[#allocation2 + $0x20] sm:$0xff] %vm989, %v977
      %995 = vst.msk [vmem:[#allocation2 + $0x28] sm:$0xff] %vm989, %v978
      %996 = vst.msk [vmem:[#allocation2 + $0x30] sm:$0xff] %vm989, %v979
      %997 = vst.msk [vmem:[#allocation2 + $0x38] sm:$0xff] %vm989, %v980
      %998 = vst.msk [vmem:[#allocation2 + $0x40] sm:$0xff] %vm989, %v981
      %999 = vst.msk [vmem:[#allocation2 + $0x48] sm:$0xff] %vm989, %v982
      %1000 = vst.msk [vmem:[#allocation2 + $0x50] sm:$0xff] %vm989, %v983
      %1001 = vst.msk [vmem:[#allocation2 + $0x58] sm:$0xff] %vm989, %v984
      %1002 = vst.msk [vmem:[#allocation2 + $0x60] sm:$0xff] %vm989, %v985
      %1003 = vst.msk [vmem:[#allocation2 + $0x68] sm:$0xff] %vm989, %v986
      %1004 = vst.msk [vmem:[#allocation2 + $0x70] sm:$0xff] %vm989, %v987
      %1005 = vst.msk [vmem:[#allocation2 + $0x78] sm:$0xff] %vm989, %v988
      %v1006 = vld [vmem:[#allocation3] sm:$0xff]
      %v1007 = vld [vmem:[#allocation3 + $0x8] sm:$0xff]
      %v1008 = vld [vmem:[#allocation3 + $0x10] sm:$0xff]
      %v1009 = vld [vmem:[#allocation3 + $0x18] sm:$0xff]
      %v1010 = vld [vmem:[#allocation3 + $0x20] sm:$0xff]
      %v1011 = vld [vmem:[#allocation3 + $0x28] sm:$0xff]
      %v1012 = vld [vmem:[#allocation3 + $0x30] sm:$0xff]
      %v1013 = vld [vmem:[#allocation3 + $0x38] sm:$0xff]
      %v1014 = vld [vmem:[#allocation3 + $0x40] sm:$0xff]
      %v1015 = vld [vmem:[#allocation3 + $0x48] sm:$0xff]
      %v1016 = vld [vmem:[#allocation3 + $0x50] sm:$0xff]
      %v1017 = vld [vmem:[#allocation3 + $0x58] sm:$0xff]
      %v1018 = vld [vmem:[#allocation3 + $0x60] sm:$0xff]
      %v1019 = vld [vmem:[#allocation3 + $0x68] sm:$0xff]
      %v1020 = vld [vmem:[#allocation3 + $0x70] sm:$0xff]
      %v1021 = vld [vmem:[#allocation3 + $0x78] sm:$0xff]
      %v1023 = vlaneseq
      %v1024 = vshrl.u32 %v1023, 7
      %v1025 = vsub.s32 0, %v1024
      %v1026 = vrot.slane %v274, %v1025
      %v1027 = vlaneseq
      %v1028 = vshrl.u32 %v1027, 7
      %v1029 = vsub.s32 1, %v1028
      %v1030 = vrot.slane %v274, %v1029
      %v1031 = vlaneseq
      %v1032 = vshrl.u32 %v1031, 7
      %v1033 = vsub.s32 2, %v1032
      %v1034 = vrot.slane %v274, %v1033
      %v1035 = vlaneseq
      %v1036 = vshrl.u32 %v1035, 7
      %v1037 = vsub.s32 3, %v1036
      %v1038 = vrot.slane %v274, %v1037
      %v1043 = vsel %vm710, %v1026, 0.0
      %v1044 = vsel %vm711, %v1030, 0.0
      %v1045 = vsel %vm712, %v1034, 0.0
      %v1046 = vsel %vm713, %v1038, 0.0
      %v1047 = vsel %vm714, %v1026, 0.0
      %v1048 = vsel %vm715, %v1030, 0.0
      %v1049 = vsel %vm716, %v1034, 0.0
      %v1050 = vsel %vm717, %v1038, 0.0
      %v1051 = vsel %vm718, %v1026, 0.0
      %v1052 = vsel %vm719, %v1030, 0.0
      %v1053 = vsel %vm720, %v1034, 0.0
      %v1054 = vsel %vm721, %v1038, 0.0
      %v1055 = vsel %vm722, %v1026, 0.0
      %v1056 = vsel %vm723, %v1030, 0.0
      %v1057 = vsel %vm724, %v1034, 0.0
      %v1058 = vsel %vm725, %v1038, 0.0
      %v1059 = vsel %vm726, %v1026, 0.0
      %v1060 = vsel %vm727, %v1030, 0.0
      %v1061 = vsel %vm728, %v1034, 0.0
      %v1062 = vsel %vm729, %v1038, 0.0
      %v1063 = vsel %vm730, %v1026, 0.0
      %v1064 = vsel %vm731, %v1030, 0.0
      %v1065 = vsel %vm732, %v1034, 0.0
      %v1066 = vsel %vm733, %v1038, 0.0
      %v1067 = vsel %vm734, %v1026, 0.0
      %v1068 = vsel %vm735, %v1030, 0.0
      %v1069 = vsel %vm736, %v1034, 0.0
      %v1070 = vsel %vm737, %v1038, 0.0
      %v1071 = vsel %vm738, %v1026, 0.0
      %v1072 = vsel %vm739, %v1030, 0.0
      %v1073 = vsel %vm740, %v1034, 0.0
      %v1074 = vsel %vm741, %v1038, 0.0
      %v1075 = vsel %vm742, %v1026, 0.0
      %v1076 = vsel %vm743, %v1030, 0.0
      %v1077 = vsel %vm744, %v1034, 0.0
      %v1078 = vsel %vm745, %v1038, 0.0
      %v1079 = vsel %vm746, %v1026, 0.0
      %v1080 = vsel %vm747, %v1030, 0.0
      %v1081 = vsel %vm748, %v1034, 0.0
      %v1082 = vsel %vm749, %v1038, 0.0
      %v1083 = vsel %vm750, %v1026, 0.0
      %v1084 = vsel %vm751, %v1030, 0.0
      %v1085 = vsel %vm752, %v1034, 0.0
      %v1086 = vsel %vm753, %v1038, 0.0
      %v1087 = vsel %vm754, %v1026, 0.0
      %v1088 = vsel %vm755, %v1030, 0.0
      %v1089 = vsel %vm756, %v1034, 0.0
      %v1090 = vsel %vm757, %v1038, 0.0
      %v1091 = vsel %vm758, %v1026, 0.0
      %v1092 = vsel %vm759, %v1030, 0.0
      %v1093 = vsel %vm760, %v1034, 0.0
      %v1094 = vsel %vm761, %v1038, 0.0
      %v1095 = vsel %vm762, %v1026, 0.0
      %v1096 = vsel %vm763, %v1030, 0.0
      %v1097 = vsel %vm764, %v1034, 0.0
      %v1098 = vsel %vm765, %v1038, 0.0
      %v1099 = vsel %vm766, %v1026, 0.0
      %v1100 = vsel %vm767, %v1030, 0.0
      %v1101 = vsel %vm768, %v1034, 0.0
      %v1102 = vsel %vm769, %v1038, 0.0
      %v1103 = vsel %vm770, %v1026, 0.0
      %v1104 = vsel %vm771, %v1030, 0.0
      %v1105 = vsel %vm772, %v1034, 0.0
      %v1106 = vsel %vm773, %v1038, 0.0
      %v1107 = vadd.f32 %v1043, %v1044
      %v1108 = vadd.f32 %v1107, %v1045
      %v1109 = vadd.f32 %v1108, %v1046
      %1110 = vadd.xlane.f32.xlu0 %v1109
      %v1111 = vpop.xlane.xlu0 %1110
      %v1112 = vadd.f32 %v1047, %v1048
      %v1113 = vadd.f32 %v1112, %v1049
      %v1114 = vadd.f32 %v1113, %v1050
      %1115 = vadd.xlane.f32.xlu0 %v1114
      %v1116 = vpop.xlane.xlu0 %1115
      %v1117 = vadd.f32 %v1051, %v1052
      %v1118 = vadd.f32 %v1117, %v1053
      %v1119 = vadd.f32 %v1118, %v1054
      %1120 = vadd.xlane.f32.xlu0 %v1119
      %v1121 = vpop.xlane.xlu0 %1120
      %v1122 = vadd.f32 %v1055, %v1056
      %v1123 = vadd.f32 %v1122, %v1057
      %v1124 = vadd.f32 %v1123, %v1058
      %1125 = vadd.xlane.f32.xlu0 %v1124
      %v1126 = vpop.xlane.xlu0 %1125
      %v1127 = vadd.f32 %v1059, %v1060
      %v1128 = vadd.f32 %v1127, %v1061
      %v1129 = vadd.f32 %v1128, %v1062
      %1130 = vadd.xlane.f32.xlu0 %v1129
      %v1131 = vpop.xlane.xlu0 %1130
      %v1132 = vadd.f32 %v1063, %v1064
      %v1133 = vadd.f32 %v1132, %v1065
      %v1134 = vadd.f32 %v1133, %v1066
      %1135 = vadd.xlane.f32.xlu0 %v1134
      %v1136 = vpop.xlane.xlu0 %1135
      %v1137 = vadd.f32 %v1067, %v1068
      %v1138 = vadd.f32 %v1137, %v1069
      %v1139 = vadd.f32 %v1138, %v1070
      %1140 = vadd.xlane.f32.xlu0 %v1139
      %v1141 = vpop.xlane.xlu0 %1140
      %v1142 = vadd.f32 %v1071, %v1072
      %v1143 = vadd.f32 %v1142, %v1073
      %v1144 = vadd.f32 %v1143, %v1074
      %1145 = vadd.xlane.f32.xlu0 %v1144
      %v1146 = vpop.xlane.xlu0 %1145
      %v1147 = vadd.f32 %v1075, %v1076
      %v1148 = vadd.f32 %v1147, %v1077
      %v1149 = vadd.f32 %v1148, %v1078
      %1150 = vadd.xlane.f32.xlu0 %v1149
      %v1151 = vpop.xlane.xlu0 %1150
      %v1152 = vadd.f32 %v1079, %v1080
      %v1153 = vadd.f32 %v1152, %v1081
      %v1154 = vadd.f32 %v1153, %v1082
      %1155 = vadd.xlane.f32.xlu0 %v1154
      %v1156 = vpop.xlane.xlu0 %1155
      %v1157 = vadd.f32 %v1083, %v1084
      %v1158 = vadd.f32 %v1157, %v1085
      %v1159 = vadd.f32 %v1158, %v1086
      %1160 = vadd.xlane.f32.xlu0 %v1159
      %v1161 = vpop.xlane.xlu0 %1160
      %v1162 = vadd.f32 %v1087, %v1088
      %v1163 = vadd.f32 %v1162, %v1089
      %v1164 = vadd.f32 %v1163, %v1090
      %1165 = vadd.xlane.f32.xlu0 %v1164
      %v1166 = vpop.xlane.xlu0 %1165
      %v1167 = vadd.f32 %v1091, %v1092
      %v1168 = vadd.f32 %v1167, %v1093
      %v1169 = vadd.f32 %v1168, %v1094
      %1170 = vadd.xlane.f32.xlu0 %v1169
      %v1171 = vpop.xlane.xlu0 %1170
      %v1172 = vadd.f32 %v1095, %v1096
      %v1173 = vadd.f32 %v1172, %v1097
      %v1174 = vadd.f32 %v1173, %v1098
      %1175 = vadd.xlane.f32.xlu0 %v1174
      %v1176 = vpop.xlane.xlu0 %1175
      %v1177 = vadd.f32 %v1099, %v1100
      %v1178 = vadd.f32 %v1177, %v1101
      %v1179 = vadd.f32 %v1178, %v1102
      %1180 = vadd.xlane.f32.xlu0 %v1179
      %v1181 = vpop.xlane.xlu0 %1180
      %v1182 = vadd.f32 %v1103, %v1104
      %v1183 = vadd.f32 %v1182, %v1105
      %v1184 = vadd.f32 %v1183, %v1106
      %1185 = vadd.xlane.f32.xlu0 %v1184
      %v1186 = vpop.xlane.xlu0 %1185
      %v1187 = vadd.f32 %v1006, %v1111
      %v1188 = vadd.f32 %v1007, %v1116
      %v1189 = vadd.f32 %v1008, %v1121
      %v1190 = vadd.f32 %v1009, %v1126
      %v1191 = vadd.f32 %v1010, %v1131
      %v1192 = vadd.f32 %v1011, %v1136
      %v1193 = vadd.f32 %v1012, %v1141
      %v1194 = vadd.f32 %v1013, %v1146
      %v1195 = vadd.f32 %v1014, %v1151
      %v1196 = vadd.f32 %v1015, %v1156
      %v1197 = vadd.f32 %v1016, %v1161
      %v1198 = vadd.f32 %v1017, %v1166
      %v1199 = vadd.f32 %v1018, %v1171
      %v1200 = vadd.f32 %v1019, %v1176
      %v1201 = vadd.f32 %v1020, %v1181
      %v1202 = vadd.f32 %v1021, %v1186
      %1203 = vst.msk [vmem:[#allocation3] sm:$0xff] %vm989, %v1187
      %1204 = vst.msk [vmem:[#allocation3 + $0x8] sm:$0xff] %vm989, %v1188
      %1205 = vst.msk [vmem:[#allocation3 + $0x10] sm:$0xff] %vm989, %v1189
      %1206 = vst.msk [vmem:[#allocation3 + $0x18] sm:$0xff] %vm989, %v1190
      %1207 = vst.msk [vmem:[#allocation3 + $0x20] sm:$0xff] %vm989, %v1191
      %1208 = vst.msk [vmem:[#allocation3 + $0x28] sm:$0xff] %vm989, %v1192
      %1209 = vst.msk [vmem:[#allocation3 + $0x30] sm:$0xff] %vm989, %v1193
      %1210 = vst.msk [vmem:[#allocation3 + $0x38] sm:$0xff] %vm989, %v1194
      %1211 = vst.msk [vmem:[#allocation3 + $0x40] sm:$0xff] %vm989, %v1195
      %1212 = vst.msk [vmem:[#allocation3 + $0x48] sm:$0xff] %vm989, %v1196
      %1213 = vst.msk [vmem:[#allocation3 + $0x50] sm:$0xff] %vm989, %v1197
      %1214 = vst.msk [vmem:[#allocation3 + $0x58] sm:$0xff] %vm989, %v1198
      %1215 = vst.msk [vmem:[#allocation3 + $0x60] sm:$0xff] %vm989, %v1199
      %1216 = vst.msk [vmem:[#allocation3 + $0x68] sm:$0xff] %vm989, %v1200
      %1217 = vst.msk [vmem:[#allocation3 + $0x70] sm:$0xff] %vm989, %v1201
      %1218 = vst.msk [vmem:[#allocation3 + $0x78] sm:$0xff] %vm989, %v1202
      %v1219 = vld [vmem:[#allocation4] sm:$0x1]
      %vm1220 = vcmask 1040384
      %v1221 = vsel %vm1220, %v1026, 0.0
      %v1222 = vsel %vm1220, %v1030, 0.0
      %v1223 = vadd.f32 %v1221, %v1222
      %v1224 = vsel %vm1220, %v1034, 0.0
      %v1225 = vadd.f32 %v1223, %v1224
      %v1226 = vsel %vm1220, %v1038, 0.0
      %v1227 = vadd.f32 %v1225, %v1226
      %1228 = vadd.xlane.f32.xlu0 %v1227
      %v1229 = vpop.xlane.xlu0 %1228
      %v1230 = vrot.slane %v1229, 4
      %v1231 = vadd.f32 %v1229, %v1230
      %v1232 = vrot.slane %v1231, 2
      %v1233 = vadd.f32 %v1231, %v1232
      %v1234 = vrot.slane %v1233, 1
      %v1235 = vadd.f32 %v1233, %v1234
      %s1236 = vtos %v1235
      %v1237 = vstv %s1236
      %v1238 = vadd.f32 %v1219, %v1237
      %vm1239 = vcmask 0
      %1240 = vst.msk [vmem:[#allocation4] sm:$0x1] %vm1239, %v1238
      // Predicated region
      $region41: #{tpu_custom_call.1} parent=35 // pred_check
        %p1241 = pneg %p774
      $region42: #{tpu_custom_call.1} parent=35 // pred_check_branch
        %1243 = sbr.rel (%p1241) target = $region44
      $region43: #{tpu_custom_call.1} parent=35 // pred_region
        %v1244 = vld [vmem:[#allocation2] sm:$0xff]
        %v1245 = vld [vmem:[#allocation2 + $0x8] sm:$0xff]
        %v1246 = vld [vmem:[#allocation2 + $0x10] sm:$0xff]
        %v1247 = vld [vmem:[#allocation2 + $0x18] sm:$0xff]
        %v1248 = vld [vmem:[#allocation2 + $0x20] sm:$0xff]
        %v1249 = vld [vmem:[#allocation2 + $0x28] sm:$0xff]
        %v1250 = vld [vmem:[#allocation2 + $0x30] sm:$0xff]
        %v1251 = vld [vmem:[#allocation2 + $0x38] sm:$0xff]
        %v1252 = vld [vmem:[#allocation2 + $0x40] sm:$0xff]
        %v1253 = vld [vmem:[#allocation2 + $0x48] sm:$0xff]
        %v1254 = vld [vmem:[#allocation2 + $0x50] sm:$0xff]
        %v1255 = vld [vmem:[#allocation2 + $0x58] sm:$0xff]
        %v1256 = vld [vmem:[#allocation2 + $0x60] sm:$0xff]
        %v1257 = vld [vmem:[#allocation2 + $0x68] sm:$0xff]
        %v1258 = vld [vmem:[#allocation2 + $0x70] sm:$0xff]
        %v1259 = vld [vmem:[#allocation2 + $0x78] sm:$0xff]
        %v1260 = vld [vmem:[#allocation4] sm:$0x1]
        %v1261 = vld [vmem:[#allocation3] sm:$0xff]
        %v1262 = vld [vmem:[#allocation3 + $0x8] sm:$0xff]
        %v1263 = vld [vmem:[#allocation3 + $0x10] sm:$0xff]
        %v1264 = vld [vmem:[#allocation3 + $0x18] sm:$0xff]
        %v1265 = vld [vmem:[#allocation3 + $0x20] sm:$0xff]
        %v1266 = vld [vmem:[#allocation3 + $0x28] sm:$0xff]
        %v1267 = vld [vmem:[#allocation3 + $0x30] sm:$0xff]
        %v1268 = vld [vmem:[#allocation3 + $0x38] sm:$0xff]
        %v1269 = vld [vmem:[#allocation3 + $0x40] sm:$0xff]
        %v1270 = vld [vmem:[#allocation3 + $0x48] sm:$0xff]
        %v1271 = vld [vmem:[#allocation3 + $0x50] sm:$0xff]
        %v1272 = vld [vmem:[#allocation3 + $0x58] sm:$0xff]
        %v1273 = vld [vmem:[#allocation3 + $0x60] sm:$0xff]
        %v1274 = vld [vmem:[#allocation3 + $0x68] sm:$0xff]
        %v1275 = vld [vmem:[#allocation3 + $0x70] sm:$0xff]
        %v1276 = vld [vmem:[#allocation3 + $0x78] sm:$0xff]
        %v1277 = vadd.f32 %v1261, %v291
        %v1278 = vadd.f32 %v1262, %v292
        %v1279 = vadd.f32 %v1263, %v293
        %v1280 = vadd.f32 %v1264, %v294
        %v1281 = vadd.f32 %v1265, %v295
        %v1282 = vadd.f32 %v1266, %v296
        %v1283 = vadd.f32 %v1267, %v297
        %v1284 = vadd.f32 %v1268, %v298
        %v1285 = vadd.f32 %v1269, %v299
        %v1286 = vadd.f32 %v1270, %v300
        %v1287 = vadd.f32 %v1271, %v301
        %v1288 = vadd.f32 %v1272, %v302
        %v1289 = vadd.f32 %v1273, %v303
        %v1290 = vadd.f32 %v1274, %v304
        %v1291 = vadd.f32 %v1275, %v305
        %v1292 = vadd.f32 %v1276, %v306
        %v1294 = vlaneseq
        %v1295 = vshrl.u32 %v1294, 7
        %v1296 = vsub.s32 0, %v1295
        %v1297 = vrot.slane %v1260, %v1296
        %v1299 = vsub.f32 %v1297, %v1277
        %v1300 = vsub.f32 %v1297, %v1278
        %v1301 = vsub.f32 %v1297, %v1279
        %v1302 = vsub.f32 %v1297, %v1280
        %v1303 = vsub.f32 %v1297, %v1281
        %v1304 = vsub.f32 %v1297, %v1282
        %v1305 = vsub.f32 %v1297, %v1283
        %v1306 = vsub.f32 %v1297, %v1284
        %v1307 = vsub.f32 %v1297, %v1285
        %v1308 = vsub.f32 %v1297, %v1286
        %v1309 = vsub.f32 %v1297, %v1287
        %v1310 = vsub.f32 %v1297, %v1288
        %v1311 = vsub.f32 %v1297, %v1289
        %v1312 = vsub.f32 %v1297, %v1290
        %v1313 = vsub.f32 %v1297, %v1291
        %v1314 = vsub.f32 %v1297, %v1292
        %v1315 = vadd.f32 %v1244, 1.0
        %v1316 = vadd.f32 %v1245, 1.0
        %v1317 = vadd.f32 %v1246, 1.0
        %v1318 = vadd.f32 %v1247, 1.0
        %v1319 = vadd.f32 %v1248, 1.0
        %v1320 = vadd.f32 %v1249, 1.0
        %v1321 = vadd.f32 %v1250, 1.0
        %v1322 = vadd.f32 %v1251, 1.0
        %v1323 = vadd.f32 %v1252, 1.0
        %v1324 = vadd.f32 %v1253, 1.0
        %v1325 = vadd.f32 %v1254, 1.0
        %v1326 = vadd.f32 %v1255, 1.0
        %v1327 = vadd.f32 %v1256, 1.0
        %v1328 = vadd.f32 %v1257, 1.0
        %v1329 = vadd.f32 %v1258, 1.0
        %v1330 = vadd.f32 %v1259, 1.0
        %v1331 = vadd.f32 %v1297, %v1315
        %v1332 = vadd.f32 %v1297, %v1316
        %v1333 = vadd.f32 %v1297, %v1317
        %v1334 = vadd.f32 %v1297, %v1318
        %v1335 = vadd.f32 %v1297, %v1319
        %v1336 = vadd.f32 %v1297, %v1320
        %v1337 = vadd.f32 %v1297, %v1321
        %v1338 = vadd.f32 %v1297, %v1322
        %v1339 = vadd.f32 %v1297, %v1323
        %v1340 = vadd.f32 %v1297, %v1324
        %v1341 = vadd.f32 %v1297, %v1325
        %v1342 = vadd.f32 %v1297, %v1326
        %v1343 = vadd.f32 %v1297, %v1327
        %v1344 = vadd.f32 %v1297, %v1328
        %v1345 = vadd.f32 %v1297, %v1329
        %v1346 = vadd.f32 %v1297, %v1330
        %v1347 = vsub.f32 %v1331, %v1277
        %v1348 = vsub.f32 %v1332, %v1278
        %v1349 = vsub.f32 %v1333, %v1279
        %v1350 = vsub.f32 %v1334, %v1280
        %v1351 = vsub.f32 %v1335, %v1281
        %v1352 = vsub.f32 %v1336, %v1282
        %v1353 = vsub.f32 %v1337, %v1283
        %v1354 = vsub.f32 %v1338, %v1284
        %v1355 = vsub.f32 %v1339, %v1285
        %v1356 = vsub.f32 %v1340, %v1286
        %v1357 = vsub.f32 %v1341, %v1287
        %v1358 = vsub.f32 %v1342, %v1288
        %v1359 = vsub.f32 %v1343, %v1289
        %v1360 = vsub.f32 %v1344, %v1290
        %v1361 = vsub.f32 %v1345, %v1291
        %v1362 = vsub.f32 %v1346, %v1292
        %v1363 = vrcp.pop %v1347
        %v1364 = vmul.f32 %v1299, %v1363
        %v1365 = vrcp.pop %v1348
        %v1366 = vmul.f32 %v1300, %v1365
        %v1367 = vrcp.pop %v1349
        %v1368 = vmul.f32 %v1301, %v1367
        %v1369 = vrcp.pop %v1350
        %v1370 = vmul.f32 %v1302, %v1369
        %v1371 = vrcp.pop %v1351
        %v1372 = vmul.f32 %v1303, %v1371
        %v1373 = vrcp.pop %v1352
        %v1374 = vmul.f32 %v1304, %v1373
        %v1375 = vrcp.pop %v1353
        %v1376 = vmul.f32 %v1305, %v1375
        %v1377 = vrcp.pop %v1354
        %v1378 = vmul.f32 %v1306, %v1377
        %v1379 = vrcp.pop %v1355
        %v1380 = vmul.f32 %v1307, %v1379
        %v1381 = vrcp.pop %v1356
        %v1382 = vmul.f32 %v1308, %v1381
        %v1383 = vrcp.pop %v1357
        %v1384 = vmul.f32 %v1309, %v1383
        %v1385 = vrcp.pop %v1358
        %v1386 = vmul.f32 %v1310, %v1385
        %v1387 = vrcp.pop %v1359
        %v1388 = vmul.f32 %v1311, %v1387
        %v1389 = vrcp.pop %v1360
        %v1390 = vmul.f32 %v1312, %v1389
        %v1391 = vrcp.pop %v1361
        %v1392 = vmul.f32 %v1313, %v1391
        %v1393 = vrcp.pop %v1362
        %v1394 = vmul.f32 %v1314, %v1393
        %v1395 = vsub.f32 1.0, %v1364
        %v1396 = vsub.f32 1.0, %v1366
        %v1397 = vsub.f32 1.0, %v1368
        %v1398 = vsub.f32 1.0, %v1370
        %v1399 = vsub.f32 1.0, %v1372
        %v1400 = vsub.f32 1.0, %v1374
        %v1401 = vsub.f32 1.0, %v1376
        %v1402 = vsub.f32 1.0, %v1378
        %v1403 = vsub.f32 1.0, %v1380
        %v1404 = vsub.f32 1.0, %v1382
        %v1405 = vsub.f32 1.0, %v1384
        %v1406 = vsub.f32 1.0, %v1386
        %v1407 = vsub.f32 1.0, %v1388
        %v1408 = vsub.f32 1.0, %v1390
        %v1409 = vsub.f32 1.0, %v1392
        %v1410 = vsub.f32 1.0, %v1394
        %v1411 = vsub.f32 %v1277, %v291
        %v1412 = vsub.f32 %v1278, %v292
        %v1413 = vsub.f32 %v1279, %v293
        %v1414 = vsub.f32 %v1280, %v294
        %v1415 = vsub.f32 %v1281, %v295
        %v1416 = vsub.f32 %v1282, %v296
        %v1417 = vsub.f32 %v1283, %v297
        %v1418 = vsub.f32 %v1284, %v298
        %v1419 = vsub.f32 %v1285, %v299
        %v1420 = vsub.f32 %v1286, %v300
        %v1421 = vsub.f32 %v1287, %v301
        %v1422 = vsub.f32 %v1288, %v302
        %v1423 = vsub.f32 %v1289, %v303
        %v1424 = vsub.f32 %v1290, %v304
        %v1425 = vsub.f32 %v1291, %v305
        %v1426 = vsub.f32 %v1292, %v306
        %v1427 = vsub.f32 %v1297, %v1411
        %v1428 = vsub.f32 %v1297, %v1412
        %v1429 = vsub.f32 %v1297, %v1413
        %v1430 = vsub.f32 %v1297, %v1414
        %v1431 = vsub.f32 %v1297, %v1415
        %v1432 = vsub.f32 %v1297, %v1416
        %v1433 = vsub.f32 %v1297, %v1417
        %v1434 = vsub.f32 %v1297, %v1418
        %v1435 = vsub.f32 %v1297, %v1419
        %v1436 = vsub.f32 %v1297, %v1420
        %v1437 = vsub.f32 %v1297, %v1421
        %v1438 = vsub.f32 %v1297, %v1422
        %v1439 = vsub.f32 %v1297, %v1423
        %v1440 = vsub.f32 %v1297, %v1424
        %v1441 = vsub.f32 %v1297, %v1425
        %v1442 = vsub.f32 %v1297, %v1426
        %v1443 = vadd.f32 %v1297, %v1244
        %v1444 = vadd.f32 %v1297, %v1245
        %v1445 = vadd.f32 %v1297, %v1246
        %v1446 = vadd.f32 %v1297, %v1247
        %v1447 = vadd.f32 %v1297, %v1248
        %v1448 = vadd.f32 %v1297, %v1249
        %v1449 = vadd.f32 %v1297, %v1250
        %v1450 = vadd.f32 %v1297, %v1251
        %v1451 = vadd.f32 %v1297, %v1252
        %v1452 = vadd.f32 %v1297, %v1253
        %v1453 = vadd.f32 %v1297, %v1254
        %v1454 = vadd.f32 %v1297, %v1255
        %v1455 = vadd.f32 %v1297, %v1256
        %v1456 = vadd.f32 %v1297, %v1257
        %v1457 = vadd.f32 %v1297, %v1258
        %v1458 = vadd.f32 %v1297, %v1259
        %v1459 = vsub.f32 %v1443, %v1411
        %v1460 = vsub.f32 %v1444, %v1412
        %v1461 = vsub.f32 %v1445, %v1413
        %v1462 = vsub.f32 %v1446, %v1414
        %v1463 = vsub.f32 %v1447, %v1415
        %v1464 = vsub.f32 %v1448, %v1416
        %v1465 = vsub.f32 %v1449, %v1417
        %v1466 = vsub.f32 %v1450, %v1418
        %v1467 = vsub.f32 %v1451, %v1419
        %v1468 = vsub.f32 %v1452, %v1420
        %v1469 = vsub.f32 %v1453, %v1421
        %v1470 = vsub.f32 %v1454, %v1422
        %v1471 = vsub.f32 %v1455, %v1423
        %v1472 = vsub.f32 %v1456, %v1424
        %v1473 = vsub.f32 %v1457, %v1425
        %v1474 = vsub.f32 %v1458, %v1426
        %vm1475 = vcmp.eq.f32.partialorder %v1244, 0.0
        %vm1476 = vcmp.eq.f32.partialorder %v1245, 0.0
        %vm1477 = vcmp.eq.f32.partialorder %v1246, 0.0
        %vm1478 = vcmp.eq.f32.partialorder %v1247, 0.0
        %vm1479 = vcmp.eq.f32.partialorder %v1248, 0.0
        %vm1480 = vcmp.eq.f32.partialorder %v1249, 0.0
        %vm1481 = vcmp.eq.f32.partialorder %v1250, 0.0
        %vm1482 = vcmp.eq.f32.partialorder %v1251, 0.0
        %vm1483 = vcmp.eq.f32.partialorder %v1252, 0.0
        %vm1484 = vcmp.eq.f32.partialorder %v1253, 0.0
        %vm1485 = vcmp.eq.f32.partialorder %v1254, 0.0
        %vm1486 = vcmp.eq.f32.partialorder %v1255, 0.0
        %vm1487 = vcmp.eq.f32.partialorder %v1256, 0.0
        %vm1488 = vcmp.eq.f32.partialorder %v1257, 0.0
        %vm1489 = vcmp.eq.f32.partialorder %v1258, 0.0
        %vm1490 = vcmp.eq.f32.partialorder %v1259, 0.0
        %v1491 = vsel %vm1475, 1.0, %v1459
        %v1492 = vsel %vm1476, 1.0, %v1460
        %v1493 = vsel %vm1477, 1.0, %v1461
        %v1494 = vsel %vm1478, 1.0, %v1462
        %v1495 = vsel %vm1479, 1.0, %v1463
        %v1496 = vsel %vm1480, 1.0, %v1464
        %v1497 = vsel %vm1481, 1.0, %v1465
        %v1498 = vsel %vm1482, 1.0, %v1466
        %v1499 = vsel %vm1483, 1.0, %v1467
        %v1500 = vsel %vm1484, 1.0, %v1468
        %v1501 = vsel %vm1485, 1.0, %v1469
        %v1502 = vsel %vm1486, 1.0, %v1470
        %v1503 = vsel %vm1487, 1.0, %v1471
        %v1504 = vsel %vm1488, 1.0, %v1472
        %v1505 = vsel %vm1489, 1.0, %v1473
        %v1506 = vsel %vm1490, 1.0, %v1474
        %v1507 = vrcp.pop %v1491
        %v1508 = vmul.f32 %v1427, %v1507
        %v1509 = vrcp.pop %v1492
        %v1510 = vmul.f32 %v1428, %v1509
        %v1511 = vrcp.pop %v1493
        %v1512 = vmul.f32 %v1429, %v1511
        %v1513 = vrcp.pop %v1494
        %v1514 = vmul.f32 %v1430, %v1513
        %v1515 = vrcp.pop %v1495
        %v1516 = vmul.f32 %v1431, %v1515
        %v1517 = vrcp.pop %v1496
        %v1518 = vmul.f32 %v1432, %v1517
        %v1519 = vrcp.pop %v1497
        %v1520 = vmul.f32 %v1433, %v1519
        %v1521 = vrcp.pop %v1498
        %v1522 = vmul.f32 %v1434, %v1521
        %v1523 = vrcp.pop %v1499
        %v1524 = vmul.f32 %v1435, %v1523
        %v1525 = vrcp.pop %v1500
        %v1526 = vmul.f32 %v1436, %v1525
        %v1527 = vrcp.pop %v1501
        %v1528 = vmul.f32 %v1437, %v1527
        %v1529 = vrcp.pop %v1502
        %v1530 = vmul.f32 %v1438, %v1529
        %v1531 = vrcp.pop %v1503
        %v1532 = vmul.f32 %v1439, %v1531
        %v1533 = vrcp.pop %v1504
        %v1534 = vmul.f32 %v1440, %v1533
        %v1535 = vrcp.pop %v1505
        %v1536 = vmul.f32 %v1441, %v1535
        %v1537 = vrcp.pop %v1506
        %v1538 = vmul.f32 %v1442, %v1537
        %v1539 = vsub.f32 1.0, %v1508
        %v1540 = vsub.f32 1.0, %v1510
        %v1541 = vsub.f32 1.0, %v1512
        %v1542 = vsub.f32 1.0, %v1514
        %v1543 = vsub.f32 1.0, %v1516
        %v1544 = vsub.f32 1.0, %v1518
        %v1545 = vsub.f32 1.0, %v1520
        %v1546 = vsub.f32 1.0, %v1522
        %v1547 = vsub.f32 1.0, %v1524
        %v1548 = vsub.f32 1.0, %v1526
        %v1549 = vsub.f32 1.0, %v1528
        %v1550 = vsub.f32 1.0, %v1530
        %v1551 = vsub.f32 1.0, %v1532
        %v1552 = vsub.f32 1.0, %v1534
        %v1553 = vsub.f32 1.0, %v1536
        %v1554 = vsub.f32 1.0, %v1538
        %v1555 = vsub.f32 %v1395, %v1539
        %v1556 = vsub.f32 %v1396, %v1540
        %v1557 = vsub.f32 %v1397, %v1541
        %v1558 = vsub.f32 %v1398, %v1542
        %v1559 = vsub.f32 %v1399, %v1543
        %v1560 = vsub.f32 %v1400, %v1544
        %v1561 = vsub.f32 %v1401, %v1545
        %v1562 = vsub.f32 %v1402, %v1546
        %v1563 = vsub.f32 %v1403, %v1547
        %v1564 = vsub.f32 %v1404, %v1548
        %v1565 = vsub.f32 %v1405, %v1549
        %v1566 = vsub.f32 %v1406, %v1550
        %v1567 = vsub.f32 %v1407, %v1551
        %v1568 = vsub.f32 %v1408, %v1552
        %v1569 = vsub.f32 %v1409, %v1553
        %v1570 = vsub.f32 %v1410, %v1554
        %v1571 = vsel %vm1475, %v1395, %v1555
        %v1572 = vsel %vm1476, %v1396, %v1556
        %v1573 = vsel %vm1477, %v1397, %v1557
        %v1574 = vsel %vm1478, %v1398, %v1558
        %v1575 = vsel %vm1479, %v1399, %v1559
        %v1576 = vsel %vm1480, %v1400, %v1560
        %v1577 = vsel %vm1481, %v1401, %v1561
        %v1578 = vsel %vm1482, %v1402, %v1562
        %v1579 = vsel %vm1483, %v1403, %v1563
        %v1580 = vsel %vm1484, %v1404, %v1564
        %v1581 = vsel %vm1485, %v1405, %v1565
        %v1582 = vsel %vm1486, %v1406, %v1566
        %v1583 = vsel %vm1487, %v1407, %v1567
        %v1584 = vsel %vm1488, %v1408, %v1568
        %v1585 = vsel %vm1489, %v1409, %v1569
        %v1586 = vsel %vm1490, %v1410, %v1570
        %vm1587 = vcmp.gt.f32.partialorder %v275, 0.0
        %vm1588 = vcmp.gt.f32.partialorder %v276, 0.0
        %vm1589 = vcmp.gt.f32.partialorder %v277, 0.0
        %vm1590 = vcmp.gt.f32.partialorder %v278, 0.0
        %vm1591 = vcmp.gt.f32.partialorder %v279, 0.0
        %vm1592 = vcmp.gt.f32.partialorder %v280, 0.0
        %vm1593 = vcmp.gt.f32.partialorder %v281, 0.0
        %vm1594 = vcmp.gt.f32.partialorder %v282, 0.0
        %vm1595 = vcmp.gt.f32.partialorder %v283, 0.0
        %vm1596 = vcmp.gt.f32.partialorder %v284, 0.0
        %vm1597 = vcmp.gt.f32.partialorder %v285, 0.0
        %vm1598 = vcmp.gt.f32.partialorder %v286, 0.0
        %vm1599 = vcmp.gt.f32.partialorder %v287, 0.0
        %vm1600 = vcmp.gt.f32.partialorder %v288, 0.0
        %vm1601 = vcmp.gt.f32.partialorder %v289, 0.0
        %vm1602 = vcmp.gt.f32.partialorder %v290, 0.0
        %v1603 = vadd.f32 %v275, 1.0
        %v1604 = vadd.f32 %v276, 1.0
        %v1605 = vadd.f32 %v277, 1.0
        %v1606 = vadd.f32 %v278, 1.0
        %v1607 = vadd.f32 %v279, 1.0
        %v1608 = vadd.f32 %v280, 1.0
        %v1609 = vadd.f32 %v281, 1.0
        %v1610 = vadd.f32 %v282, 1.0
        %v1611 = vadd.f32 %v283, 1.0
        %v1612 = vadd.f32 %v284, 1.0
        %v1613 = vadd.f32 %v285, 1.0
        %v1614 = vadd.f32 %v286, 1.0
        %v1615 = vadd.f32 %v287, 1.0
        %v1616 = vadd.f32 %v288, 1.0
        %v1617 = vadd.f32 %v289, 1.0
        %v1618 = vadd.f32 %v290, 1.0
        %v1619 = vmul.f32 %v275, 1.442695
        %v1620 = vpow.pop %v1619
        %v1621 = vmul.f32 %v276, 1.442695
        %v1622 = vpow.pop %v1621
        %v1623 = vmul.f32 %v277, 1.442695
        %v1624 = vpow.pop %v1623
        %v1625 = vmul.f32 %v278, 1.442695
        %v1626 = vpow.pop %v1625
        %v1627 = vmul.f32 %v279, 1.442695
        %v1628 = vpow.pop %v1627
        %v1629 = vmul.f32 %v280, 1.442695
        %v1630 = vpow.pop %v1629
        %v1631 = vmul.f32 %v281, 1.442695
        %v1632 = vpow.pop %v1631
        %v1633 = vmul.f32 %v282, 1.442695
        %v1634 = vpow.pop %v1633
        %v1635 = vmul.f32 %v283, 1.442695
        %v1636 = vpow.pop %v1635
        %v1637 = vmul.f32 %v284, 1.442695
        %v1638 = vpow.pop %v1637
        %v1639 = vmul.f32 %v285, 1.442695
        %v1640 = vpow.pop %v1639
        %v1641 = vmul.f32 %v286, 1.442695
        %v1642 = vpow.pop %v1641
        %v1643 = vmul.f32 %v287, 1.442695
        %v1644 = vpow.pop %v1643
        %v1645 = vmul.f32 %v288, 1.442695
        %v1646 = vpow.pop %v1645
        %v1647 = vmul.f32 %v289, 1.442695
        %v1648 = vpow.pop %v1647
        %v1649 = vmul.f32 %v290, 1.442695
        %v1650 = vpow.pop %v1649
        %v1651 = vsel %vm1587, %v1603, %v1620
        %v1652 = vsel %vm1588, %v1604, %v1622
        %v1653 = vsel %vm1589, %v1605, %v1624
        %v1654 = vsel %vm1590, %v1606, %v1626
        %v1655 = vsel %vm1591, %v1607, %v1628
        %v1656 = vsel %vm1592, %v1608, %v1630
        %v1657 = vsel %vm1593, %v1609, %v1632
        %v1658 = vsel %vm1594, %v1610, %v1634
        %v1659 = vsel %vm1595, %v1611, %v1636
        %v1660 = vsel %vm1596, %v1612, %v1638
        %v1661 = vsel %vm1597, %v1613, %v1640
        %v1662 = vsel %vm1598, %v1614, %v1642
        %v1663 = vsel %vm1599, %v1615, %v1644
        %v1664 = vsel %vm1600, %v1616, %v1646
        %v1665 = vsel %vm1601, %v1617, %v1648
        %v1666 = vsel %vm1602, %v1618, %v1650
        %v1667 = vmul.f32 %v1651, %v1571
        %v1668 = vmul.f32 %v1652, %v1572
        %v1669 = vmul.f32 %v1653, %v1573
        %v1670 = vmul.f32 %v1654, %v1574
        %v1671 = vmul.f32 %v1655, %v1575
        %v1672 = vmul.f32 %v1656, %v1576
        %v1673 = vmul.f32 %v1657, %v1577
        %v1674 = vmul.f32 %v1658, %v1578
        %v1675 = vmul.f32 %v1659, %v1579
        %v1676 = vmul.f32 %v1660, %v1580
        %v1677 = vmul.f32 %v1661, %v1581
        %v1678 = vmul.f32 %v1662, %v1582
        %v1679 = vmul.f32 %v1663, %v1583
        %v1680 = vmul.f32 %v1664, %v1584
        %v1681 = vmul.f32 %v1665, %v1585
        %v1682 = vmul.f32 %v1666, %v1586
        %1683 = vst.msk [vmem:[%s271] sm:$0xff] %vm989, %v1667
        %1684 = vst.msk [vmem:[%s271 + $0x8] sm:$0xff] %vm989, %v1668
        %1685 = vst.msk [vmem:[%s271 + $0x10] sm:$0xff] %vm989, %v1669
        %1686 = vst.msk [vmem:[%s271 + $0x18] sm:$0xff] %vm989, %v1670
        %1687 = vst.msk [vmem:[%s271 + $0x20] sm:$0xff] %vm989, %v1671
        %1688 = vst.msk [vmem:[%s271 + $0x28] sm:$0xff] %vm989, %v1672
        %1689 = vst.msk [vmem:[%s271 + $0x30] sm:$0xff] %vm989, %v1673
        %1690 = vst.msk [vmem:[%s271 + $0x38] sm:$0xff] %vm989, %v1674
        %1691 = vst.msk [vmem:[%s271 + $0x40] sm:$0xff] %vm989, %v1675
        %1692 = vst.msk [vmem:[%s271 + $0x48] sm:$0xff] %vm989, %v1676
        %1693 = vst.msk [vmem:[%s271 + $0x50] sm:$0xff] %vm989, %v1677
        %1694 = vst.msk [vmem:[%s271 + $0x58] sm:$0xff] %vm989, %v1678
        %1695 = vst.msk [vmem:[%s271 + $0x60] sm:$0xff] %vm989, %v1679
        %1696 = vst.msk [vmem:[%s271 + $0x68] sm:$0xff] %vm989, %v1680
        %1697 = vst.msk [vmem:[%s271 + $0x70] sm:$0xff] %vm989, %v1681
        %1698 = vst.msk [vmem:[%s271 + $0x78] sm:$0xff] %vm989, %v1682
      $region44: #{tpu_custom_call.1} parent=35 // pred_fallthru
        _
      %s1699 = smul.u32 16, %s19
      %p1700 = scmp.lt.s32.totalorder %s1699, 63
      %s1701 = scalar_select %p1700, %s1699, 63
      %s1702 = smul.addr %s1701, 8
      %s1703 = scalar_lea.vmem %s4, %s1702
      // Predicated region
      $region45: #{tpu_custom_call.1} parent=35 // pred_check
        %p1704 = pneg %p149
      $region46: #{tpu_custom_call.1} parent=35 // pred_check_branch
        %1706 = sbr.rel (%p1704) target = $region48
      $region47: #{tpu_custom_call.1} parent=35 // pred_region
        %s1707 = smul.u32 16, %s19
      $region48: #{tpu_custom_call.1} parent=35 // pred_fallthru
        _
    $region36: #{tpu_custom_call.1} parent=5 // pred_fallthru
      _
    %p1708 = scmp.le.s32.totalorder 2, %s10
    // Predicated region
    $region49: #{tpu_custom_call.1} parent=5 // pred_check
      %p1709 = pneg %p1708
    $region50: #{tpu_custom_call.1} parent=5 // pred_check_branch
      %1711 = sbr.rel (%p1709) target = $region52
    $region51: #{tpu_custom_call.1} parent=5 // pred_region
      %s1712 = ssub.s32 %s10, 2
      // Predicated region
      $region53: #{tpu_custom_call.1} parent=51 // pred_check
        %p1713 = pneg %p155
      $region54: #{tpu_custom_call.1} parent=51 // pred_check_branch
        %1715 = sbr.rel (%p1713) target = $region56
      $region55: #{tpu_custom_call.1} parent=51 // pred_region
        %s1716 = smul.u32 16, %s21
        %p1717 = scmp.lt.s32.totalorder %s1716, 63
        %s1718 = scalar_select %p1717, %s1716, 63
        %s1719 = smul.addr %s1718, 8
        %s1720 = scalar_lea.vmem %s4, %s1719
      $region56: #{tpu_custom_call.1} parent=51 // pred_fallthru
        _
    $region52: #{tpu_custom_call.1} parent=5 // pred_fallthru
      _
  $region6: #{tpu_custom_call.1} parent=0 // loop_footer
    %s14 = sadd.s32 1, %s10
  $region7: #{tpu_custom_call.1} parent=0 // loop_footer_branch
    %9 = sbr.rel target = $region3
  $region8: #{tpu_custom_call.1} parent=0 // loop_exit
    _

</llo_original>
